<compile_context>
chip_gen: v7x
topology: tpu7x:2x2x1
jax: 0.10.0
libtpu: 0.0.40
codegen_flags: <defaults>
</compile_context>

<pallas_src>
import functools

import numpy as np
import jax
import jax.numpy as jnp
from jax.experimental import pallas as pl
from jax.experimental.pallas import tpu as pltpu


# ----------------------------------------------------------------------------
# Fused (conv-folded) stacked-LSTM + Linear kernel. Gridless, scratch-free.
# ----------------------------------------------------------------------------
def _stacked_lstm_kernel(
    x_ref,      # (N, 2L) f32          raw input rows, one per LSTM sequence
    w0_ref,     # (2L, T*4H) bf16      conv1x1+permute+reshape folded into layer-0 W_ih
    b0_ref,     # (1, T*4H) f32        folded conv bias + layer-0 (b_ih+b_hh), per step
    wihr_ref,   # (max(L-1,1), H, 4H)  bf16  W_ih^T for layers 1..L-1
    whh_ref,    # (L, H, 4H) bf16      W_hh^T per layer
    br_ref,     # (max(L-1,1), 1, 4H)  f32   b_ih+b_hh for layers 1..L-1
    wlin_ref,   # (T, H, 2) bf16       final Linear weight split per time step
    blin_ref,   # (1, 2) f32
    o_ref,      # (N, 2) f32
    *,
    num_layers,
    hidden,
    seq_len,
    batch,
):
    H, T, N = hidden, seq_len, batch

    # Layer-0 input-side gates for ALL steps: one hoisted matmul, bias folded.
    gx_all = jnp.dot(x_ref[...].astype(jnp.bfloat16), w0_ref[...],
                     preferred_element_type=jnp.float32) + b0_ref[...]
    # 4H == 128 -> 128-lane-aligned slices: pure vreg selection, no VMEM.
    gx_steps = [gx_all[:, t * 4 * H:(t + 1) * 4 * H] for t in range(T)]

    acc = jnp.zeros((N, 2), jnp.float32)
    for layer in range(num_layers):                      # static layer loop
        last = layer == num_layers - 1
        whh = whh_ref[layer]                             # (H, 4H) bf16
        h = jnp.zeros((N, H), jnp.float32)
        c = jnp.zeros((N, H), jnp.float32)
        next_gx = []
        for t in range(T):                               # fully unrolled
            g = gx_steps[t] + jnp.dot(h.astype(jnp.bfloat16), whh,
                                      preferred_element_type=jnp.float32)
            s = jax.nn.sigmoid(g)                        # one pass over full 4H
            i_g = s[:, 0:H]
            f_g = s[:, H:2 * H]
            o_g = s[:, 3 * H:4 * H]
            g_g = jnp.tanh(g[:, 2 * H:3 * H])
            c = f_g * c + i_g * g_g
            h = o_g * jnp.tanh(c)
            hb = h.astype(jnp.bfloat16)
            if last:
                # Fold Linear(H*T, 2) into the last layer's recurrence.
                acc = acc + jnp.dot(hb, wlin_ref[t],
                                    preferred_element_type=jnp.float32)
            else:
                # Fold the NEXT layer's input-side matmul into this step;
                # result is carried in registers to the next layer iteration.
                next_gx.append(
                    jnp.dot(hb, wihr_ref[layer],
                            preferred_element_type=jnp.float32) + br_ref[layer])
        gx_steps = next_gx

    o_ref[...] = acc + blin_ref[...]


# ----------------------------------------------------------------------------
# Forward pass: one metadata reshape -> fused kernel.  (N == B at these shapes;
# batch is tiny, so no grid / megacore sharding — see review note for v7x.)
# ----------------------------------------------------------------------------
def stacked_lstm_forward(x, kp, *, input_size, layer_num, hidden_size,
                         seq_length):
    B, Lsp, C = x.shape                     # C == 2
    T, D, H = seq_length, input_size, hidden_size
    # Fold assumption: each batch row's conv output is exactly one sequence.
    assert C * Lsp == T * D, "conv fold assumes one LSTM sequence per batch item"
    x_rows = x.reshape(B, Lsp * C)          # free metadata reshape (row-major)

    kernel = functools.partial(
        _stacked_lstm_kernel, num_layers=layer_num, hidden=H,
        seq_len=T, batch=B)
    return pl.pallas_call(
        kernel,
        out_shape=jax.ShapeDtypeStruct((B, 2), jnp.float32),
        in_specs=[pl.BlockSpec(memory_space=pltpu.MemorySpace.VMEM)] * 8,
        out_specs=pl.BlockSpec(memory_space=pltpu.MemorySpace.VMEM),
    )(x_rows, kp["w0"], kp["b0"], kp["wihr"], kp["whh"], kp["br"],
      kp["wlin"], kp["blin"])


# ----------------------------------------------------------------------------
# Raw (torch-layout) parameters — deterministic synthetic init.
# ----------------------------------------------------------------------------
def init_raw_params(key, input_size, layer_num, hidden_size, seq_length):
    D, H, T = input_size, hidden_size, seq_length
    keys = iter(jax.random.split(key, 4 + 4 * layer_num))

    def u(shape, scale):
        return jax.random.uniform(next(keys), shape, jnp.float32, -scale, scale)

    cs = 1.0 / (2.0 ** 0.5)
    raw = dict(conv_w=u((2, 2), cs),        # (out, in) == torch conv weight[:, :, 0]
               conv_b=u((2,), cs),
               w_ih=[], w_hh=[], b_ih=[], b_hh=[])
    ls = 1.0 / (H ** 0.5)
    for layer in range(layer_num):
        in_dim = D if layer == 0 else H
        raw["w_ih"].append(u((4 * H, in_dim), ls))   # gate order i,f,g,o
        raw["w_hh"].append(u((4 * H, H), ls))
        raw["b_ih"].append(u((4 * H,), ls))
        raw["b_hh"].append(u((4 * H,), ls))
    fs = 1.0 / ((H * T) ** 0.5)
    raw["lin_w"] = u((2, H * T), fs)
    raw["lin_b"] = u((2,), fs)
    return raw


# ----------------------------------------------------------------------------
# Host-side packing: fold conv1x1 (+ permute + reshape) into layer-0 weights,
# transpose to (in, 4H) layouts, cast MXU operands to bf16.
# ----------------------------------------------------------------------------
def pack_kernel_params(raw, *, input_size, layer_num, hidden_size, seq_length,
                       in_len):
    D, H, T = input_size, hidden_size, seq_length
    C, Lsp = 2, in_len
    assert C * Lsp == T * D

    conv_w = np.asarray(raw["conv_w"], np.float32)       # (out, in)
    conv_b = np.asarray(raw["conv_b"], np.float32)
    wih0T = np.asarray(raw["w_ih"][0], np.float32).T     # (D, 4H)

    # z[n,t,d] = sum_i conv_w[o(t,d), i] * x[n, l(t,d), i] + conv_b[o(t,d)]
    # with (o, l) = divmod(t*D + d, Lsp); compose with layer-0 W_ih per step.
    w0 = np.zeros((Lsp * C, T * 4 * H), np.float32)
    b0 = np.zeros((T * 4 * H,), np.float32)
    for t in range(T):
        sl = slice(t * 4 * H, (t + 1) * 4 * H)
        for d in range(D):
            o, l = divmod(t * D + d, Lsp)
            for i in range(C):
                w0[l * C + i, sl] += conv_w[o, i] * wih0T[d]
            b0[sl] += conv_b[o] * wih0T[d]
        b0[sl] += np.asarray(raw["b_ih"][0], np.float32) \
            + np.asarray(raw["b_hh"][0], np.float32)

    whh = np.stack([np.asarray(w, np.float32).T for w in raw["w_hh"]])  # (L,H,4H)
    if layer_num > 1:
        wihr = np.stack([np.asarray(w, np.float32).T
                         for w in raw["w_ih"][1:]])                     # (L-1,H,4H)
        br = np.stack([(np.asarray(raw["b_ih"][j], np.float32)
                        + np.asarray(raw["b_hh"][j], np.float32)).reshape(1, 4 * H)
                       for j in range(1, layer_num)])                   # (L-1,1,4H)
    else:
        wihr = np.zeros((1, H, 4 * H), np.float32)       # unused dummies
        br = np.zeros((1, 1, 4 * H), np.float32)

    lin_w = np.asarray(raw["lin_w"], np.float32)                        # (2, H*T)
    wlin = np.transpose(lin_w.reshape(2, T, H), (1, 2, 0))              # (T, H, 2)
    blin = np.asarray(raw["lin_b"], np.float32).reshape(1, 2)

    bf = jnp.bfloat16
    return dict(w0=jnp.asarray(w0, bf),
                b0=jnp.asarray(b0, jnp.float32).reshape(1, -1),
                wihr=jnp.asarray(wihr, bf),
                whh=jnp.asarray(whh, bf),
                br=jnp.asarray(br, jnp.float32),
                wlin=jnp.asarray(wlin, bf),
                blin=jnp.asarray(blin, jnp.float32))


# ----------------------------------------------------------------------------
# Pure-JAX f32 reference implementing the ORIGINAL module math from raw params.
# ----------------------------------------------------------------------------
def reference_forward(x, raw, *, input_size, layer_num, hidden_size,
                      seq_length):
    B, Lsp, C = x.shape
    T, D, H = seq_length, input_size, hidden_size
    xp = jnp.transpose(x, (0, 2, 1))                               # (B, C, L)
    y = jnp.einsum("oc,bcl->bol", raw["conv_w"], xp) \
        + raw["conv_b"][None, :, None]                             # conv1x1
    z = y.reshape(-1, T, D)                                        # (N, T, D)
    N = z.shape[0]
    layer_in = z
    for layer in range(layer_num):
        wih, whh = raw["w_ih"][layer], raw["w_hh"][layer]
        b = raw["b_ih"][layer] + raw["b_hh"][layer]
        h = jnp.zeros((N, H), jnp.float32)
        c = jnp.zeros((N, H), jnp.float32)
        outs = []
        for t in range(T):
            g = layer_in[:, t, :] @ wih.T + h @ whh.T + b
            i_g = jax.nn.sigmoid(g[:, :H])
            f_g = jax.nn.sigmoid(g[:, H:2 * H])
            g_g = jnp.tanh(g[:, 2 * H:3 * H])
            o_g = jax.nn.sigmoid(g[:, 3 * H:])
            c = f_g * c + i_g * g_g
            h = o_g * jnp.tanh(c)
            outs.append(h)
        layer_in = jnp.stack(outs, axis=1)                         # (N, T, H)
    flat = layer_in.reshape(N, T * H)                              # t-major
    return flat @ raw["lin_w"].T + raw["lin_b"]


if __name__ == "__main__":
    # Module hyper-parameters (small, consistent with the forward pass):
    input_size, layer_num, hidden_size, seq_length = 4, 2, 32, 8
    B, Lsp, C = 2, 16, 2    # C*Lsp == seq_length*input_size  ->  N == B == 2

    key = jax.random.PRNGKey(0)
    kx, kp = jax.random.split(key)
    x = jax.random.normal(kx, (B, Lsp, C), jnp.float32)

    raw = init_raw_params(kp, input_size, layer_num, hidden_size, seq_length)
    kparams = pack_kernel_params(raw, input_size=input_size,
                                 layer_num=layer_num, hidden_size=hidden_size,
                                 seq_length=seq_length, in_len=Lsp)

    fwd = jax.jit(functools.partial(
        stacked_lstm_forward, input_size=input_size, layer_num=layer_num,
        hidden_size=hidden_size, seq_length=seq_length))
    out = jax.block_until_ready(fwd(x, kparams))

    ref = reference_forward(
        x, raw, input_size=input_size, layer_num=layer_num,
        hidden_size=hidden_size, seq_length=seq_length)

    assert out.shape == (B, 2), out.shape
    # bf16 MXU operands (deliberate latency/precision trade per review) vs.
    # a full-f32 reference -> 2e-2 tolerance; structural bugs would show as
    # O(0.1) errors and still be caught.
    assert jnp.allclose(out, ref, atol=2e-2, rtol=2e-2), (out, ref)

    print("KERNEL_OK")
</pallas_src>

<mosaic_0001>
module attributes {stable_mosaic.version = 11 : i64} {
  func.func @_stacked_lstm_kernel(%arg0: memref<2x32xf32, #tpu.memory_space<vmem>>, %arg1: memref<32x1024xbf16, #tpu.memory_space<vmem>>, %arg2: memref<1x1024xf32, #tpu.memory_space<vmem>>, %arg3: memref<1x32x128xbf16, #tpu.memory_space<vmem>>, %arg4: memref<2x32x128xbf16, #tpu.memory_space<vmem>>, %arg5: memref<1x1x128xf32, #tpu.memory_space<vmem>>, %arg6: memref<8x32x2xbf16, #tpu.memory_space<vmem>>, %arg7: memref<1x2xf32, #tpu.memory_space<vmem>>, %arg8: memref<2x2xf32, #tpu.memory_space<vmem>>) attributes {dimension_semantics = [], scalar_prefetch = 0 : i64, scratch_operands = 0 : i64, tpu.core_type = #tpu.core_type<tc>} {
    %c0 = arith.constant 0 : index
    %c0_0 = arith.constant 0 : index
    %0 = vector.load %arg0[%c0, %c0_0] : memref<2x32xf32, #tpu.memory_space<vmem>>, vector<2x32xf32>
    %1 = arith.truncf %0 : vector<2x32xf32> to vector<2x32xbf16>
    %c0_1 = arith.constant 0 : index
    %c0_2 = arith.constant 0 : index
    %2 = vector.load %arg1[%c0_1, %c0_2] : memref<32x1024xbf16, #tpu.memory_space<vmem>>, vector<32x1024xbf16>
    %cst = arith.constant dense<0.000000e+00> : vector<2x1024xf32>
    %3 = tpu.matmul %1, %2, %cst {dimension_numbers = #tpu.dot_dimension_numbers<[1], [0], [0], [1], [0, 0, 1, 1], [], []>} : vector<2x32xbf16>, vector<32x1024xbf16>, vector<2x1024xf32> -> vector<2x1024xf32>
    %c0_3 = arith.constant 0 : index
    %c0_4 = arith.constant 0 : index
    %4 = vector.load %arg2[%c0_3, %c0_4] : memref<1x1024xf32, #tpu.memory_space<vmem>>, vector<1x1024xf32>
    %5 = vector.broadcast %4 : vector<1x1024xf32> to vector<2x1024xf32>
    %6 = arith.addf %3, %5 : vector<2x1024xf32>
    %7 = vector.extract_strided_slice %6 {offsets = [0, 0], sizes = [2, 128], strides = [1, 1]} : vector<2x1024xf32> to vector<2x128xf32>
    %8 = vector.extract_strided_slice %6 {offsets = [0, 128], sizes = [2, 128], strides = [1, 1]} : vector<2x1024xf32> to vector<2x128xf32>
    %9 = vector.extract_strided_slice %6 {offsets = [0, 256], sizes = [2, 128], strides = [1, 1]} : vector<2x1024xf32> to vector<2x128xf32>
    %10 = vector.extract_strided_slice %6 {offsets = [0, 384], sizes = [2, 128], strides = [1, 1]} : vector<2x1024xf32> to vector<2x128xf32>
    %11 = vector.extract_strided_slice %6 {offsets = [0, 512], sizes = [2, 128], strides = [1, 1]} : vector<2x1024xf32> to vector<2x128xf32>
    %12 = vector.extract_strided_slice %6 {offsets = [0, 640], sizes = [2, 128], strides = [1, 1]} : vector<2x1024xf32> to vector<2x128xf32>
    %13 = vector.extract_strided_slice %6 {offsets = [0, 768], sizes = [2, 128], strides = [1, 1]} : vector<2x1024xf32> to vector<2x128xf32>
    %14 = vector.extract_strided_slice %6 {offsets = [0, 896], sizes = [2, 128], strides = [1, 1]} : vector<2x1024xf32> to vector<2x128xf32>
    %cst_5 = arith.constant 0.000000e+00 : f32
    %15 = vector.broadcast %cst_5 : f32 to vector<2x2xf32>
    %c0_6 = arith.constant 0 : index
    %c0_7 = arith.constant 0 : index
    %c0_8 = arith.constant 0 : index
    %16 = vector.load %arg4[%c0_6, %c0_7, %c0_8] : memref<2x32x128xbf16, #tpu.memory_space<vmem>>, vector<1x32x128xbf16>
    %17 = vector.shape_cast %16 : vector<1x32x128xbf16> to vector<32x128xbf16>
    %cst_9 = arith.constant 0.000000e+00 : f32
    %18 = vector.broadcast %cst_9 : f32 to vector<2x32xf32>
    %cst_10 = arith.constant 0.000000e+00 : f32
    %19 = vector.broadcast %cst_10 : f32 to vector<2x32xf32>
    %20 = arith.truncf %18 : vector<2x32xf32> to vector<2x32xbf16>
    %cst_11 = arith.constant dense<0.000000e+00> : vector<2x128xf32>
    %21 = tpu.matmul %20, %17, %cst_11 {dimension_numbers = #tpu.dot_dimension_numbers<[1], [0], [0], [1], [0, 0, 1, 1], [], []>} : vector<2x32xbf16>, vector<32x128xbf16>, vector<2x128xf32> -> vector<2x128xf32>
    %22 = arith.addf %7, %21 : vector<2x128xf32>
    %23 = arith.negf %22 : vector<2x128xf32>
    %24 = math.exp %23 : vector<2x128xf32>
    %cst_12 = arith.constant 1.000000e+00 : f32
    %25 = vector.broadcast %cst_12 : f32 to vector<2x128xf32>
    %26 = arith.addf %25, %24 : vector<2x128xf32>
    %27 = arith.divf %25, %26 : vector<2x128xf32>
    %28 = vector.extract_strided_slice %27 {offsets = [0, 0], sizes = [2, 32], strides = [1, 1]} : vector<2x128xf32> to vector<2x32xf32>
    %29 = vector.extract_strided_slice %27 {offsets = [0, 32], sizes = [2, 32], strides = [1, 1]} : vector<2x128xf32> to vector<2x32xf32>
    %30 = vector.extract_strided_slice %27 {offsets = [0, 96], sizes = [2, 32], strides = [1, 1]} : vector<2x128xf32> to vector<2x32xf32>
    %31 = vector.extract_strided_slice %22 {offsets = [0, 64], sizes = [2, 32], strides = [1, 1]} : vector<2x128xf32> to vector<2x32xf32>
    %32 = math.tanh %31 : vector<2x32xf32>
    %33 = arith.mulf %29, %19 : vector<2x32xf32>
    %34 = arith.mulf %28, %32 : vector<2x32xf32>
    %35 = arith.addf %33, %34 : vector<2x32xf32>
    %36 = math.tanh %35 : vector<2x32xf32>
    %37 = arith.mulf %30, %36 : vector<2x32xf32>
    %38 = arith.truncf %37 : vector<2x32xf32> to vector<2x32xbf16>
    %c0_13 = arith.constant 0 : index
    %c0_14 = arith.constant 0 : index
    %c0_15 = arith.constant 0 : index
    %39 = vector.load %arg3[%c0_13, %c0_14, %c0_15] : memref<1x32x128xbf16, #tpu.memory_space<vmem>>, vector<1x32x128xbf16>
    %40 = vector.shape_cast %39 : vector<1x32x128xbf16> to vector<32x128xbf16>
    %cst_16 = arith.constant dense<0.000000e+00> : vector<2x128xf32>
    %41 = tpu.matmul %38, %40, %cst_16 {dimension_numbers = #tpu.dot_dimension_numbers<[1], [0], [0], [1], [0, 0, 1, 1], [], []>} : vector<2x32xbf16>, vector<32x128xbf16>, vector<2x128xf32> -> vector<2x128xf32>
    %c0_17 = arith.constant 0 : index
    %c0_18 = arith.constant 0 : index
    %c0_19 = arith.constant 0 : index
    %42 = vector.load %arg5[%c0_17, %c0_18, %c0_19] : memref<1x1x128xf32, #tpu.memory_space<vmem>>, vector<1x1x128xf32>
    %43 = vector.shape_cast %42 : vector<1x1x128xf32> to vector<1x128xf32>
    %44 = vector.broadcast %43 : vector<1x128xf32> to vector<2x128xf32>
    %45 = arith.addf %41, %44 : vector<2x128xf32>
    %46 = arith.truncf %37 : vector<2x32xf32> to vector<2x32xbf16>
    %cst_20 = arith.constant dense<0.000000e+00> : vector<2x128xf32>
    %47 = tpu.matmul %46, %17, %cst_20 {dimension_numbers = #tpu.dot_dimension_numbers<[1], [0], [0], [1], [0, 0, 1, 1], [], []>} : vector<2x32xbf16>, vector<32x128xbf16>, vector<2x128xf32> -> vector<2x128xf32>
    %48 = arith.addf %8, %47 : vector<2x128xf32>
    %49 = arith.negf %48 : vector<2x128xf32>
    %50 = math.exp %49 : vector<2x128xf32>
    %cst_21 = arith.constant 1.000000e+00 : f32
    %51 = vector.broadcast %cst_21 : f32 to vector<2x128xf32>
    %52 = arith.addf %51, %50 : vector<2x128xf32>
    %53 = arith.divf %51, %52 : vector<2x128xf32>
    %54 = vector.extract_strided_slice %53 {offsets = [0, 0], sizes = [2, 32], strides = [1, 1]} : vector<2x128xf32> to vector<2x32xf32>
    %55 = vector.extract_strided_slice %53 {offsets = [0, 32], sizes = [2, 32], strides = [1, 1]} : vector<2x128xf32> to vector<2x32xf32>
    %56 = vector.extract_strided_slice %53 {offsets = [0, 96], sizes = [2, 32], strides = [1, 1]} : vector<2x128xf32> to vector<2x32xf32>
    %57 = vector.extract_strided_slice %48 {offsets = [0, 64], sizes = [2, 32], strides = [1, 1]} : vector<2x128xf32> to vector<2x32xf32>
    %58 = math.tanh %57 : vector<2x32xf32>
    %59 = arith.mulf %55, %35 : vector<2x32xf32>
    %60 = arith.mulf %54, %58 : vector<2x32xf32>
    %61 = arith.addf %59, %60 : vector<2x32xf32>
    %62 = math.tanh %61 : vector<2x32xf32>
    %63 = arith.mulf %56, %62 : vector<2x32xf32>
    %64 = arith.truncf %63 : vector<2x32xf32> to vector<2x32xbf16>
    %c0_22 = arith.constant 0 : index
    %c0_23 = arith.constant 0 : index
    %c0_24 = arith.constant 0 : index
    %65 = vector.load %arg3[%c0_22, %c0_23, %c0_24] : memref<1x32x128xbf16, #tpu.memory_space<vmem>>, vector<1x32x128xbf16>
    %66 = vector.shape_cast %65 : vector<1x32x128xbf16> to vector<32x128xbf16>
    %cst_25 = arith.constant dense<0.000000e+00> : vector<2x128xf32>
    %67 = tpu.matmul %64, %66, %cst_25 {dimension_numbers = #tpu.dot_dimension_numbers<[1], [0], [0], [1], [0, 0, 1, 1], [], []>} : vector<2x32xbf16>, vector<32x128xbf16>, vector<2x128xf32> -> vector<2x128xf32>
    %c0_26 = arith.constant 0 : index
    %c0_27 = arith.constant 0 : index
    %c0_28 = arith.constant 0 : index
    %68 = vector.load %arg5[%c0_26, %c0_27, %c0_28] : memref<1x1x128xf32, #tpu.memory_space<vmem>>, vector<1x1x128xf32>
    %69 = vector.shape_cast %68 : vector<1x1x128xf32> to vector<1x128xf32>
    %70 = vector.broadcast %69 : vector<1x128xf32> to vector<2x128xf32>
    %71 = arith.addf %67, %70 : vector<2x128xf32>
    %72 = arith.truncf %63 : vector<2x32xf32> to vector<2x32xbf16>
    %cst_29 = arith.constant dense<0.000000e+00> : vector<2x128xf32>
    %73 = tpu.matmul %72, %17, %cst_29 {dimension_numbers = #tpu.dot_dimension_numbers<[1], [0], [0], [1], [0, 0, 1, 1], [], []>} : vector<2x32xbf16>, vector<32x128xbf16>, vector<2x128xf32> -> vector<2x128xf32>
    %74 = arith.addf %9, %73 : vector<2x128xf32>
    %75 = arith.negf %74 : vector<2x128xf32>
    %76 = math.exp %75 : vector<2x128xf32>
    %cst_30 = arith.constant 1.000000e+00 : f32
    %77 = vector.broadcast %cst_30 : f32 to vector<2x128xf32>
    %78 = arith.addf %77, %76 : vector<2x128xf32>
    %79 = arith.divf %77, %78 : vector<2x128xf32>
    %80 = vector.extract_strided_slice %79 {offsets = [0, 0], sizes = [2, 32], strides = [1, 1]} : vector<2x128xf32> to vector<2x32xf32>
    %81 = vector.extract_strided_slice %79 {offsets = [0, 32], sizes = [2, 32], strides = [1, 1]} : vector<2x128xf32> to vector<2x32xf32>
    %82 = vector.extract_strided_slice %79 {offsets = [0, 96], sizes = [2, 32], strides = [1, 1]} : vector<2x128xf32> to vector<2x32xf32>
    %83 = vector.extract_strided_slice %74 {offsets = [0, 64], sizes = [2, 32], strides = [1, 1]} : vector<2x128xf32> to vector<2x32xf32>
    %84 = math.tanh %83 : vector<2x32xf32>
    %85 = arith.mulf %81, %61 : vector<2x32xf32>
    %86 = arith.mulf %80, %84 : vector<2x32xf32>
    %87 = arith.addf %85, %86 : vector<2x32xf32>
    %88 = math.tanh %87 : vector<2x32xf32>
    %89 = arith.mulf %82, %88 : vector<2x32xf32>
    %90 = arith.truncf %89 : vector<2x32xf32> to vector<2x32xbf16>
    %c0_31 = arith.constant 0 : index
    %c0_32 = arith.constant 0 : index
    %c0_33 = arith.constant 0 : index
    %91 = vector.load %arg3[%c0_31, %c0_32, %c0_33] : memref<1x32x128xbf16, #tpu.memory_space<vmem>>, vector<1x32x128xbf16>
    %92 = vector.shape_cast %91 : vector<1x32x128xbf16> to vector<32x128xbf16>
    %cst_34 = arith.constant dense<0.000000e+00> : vector<2x128xf32>
    %93 = tpu.matmul %90, %92, %cst_34 {dimension_numbers = #tpu.dot_dimension_numbers<[1], [0], [0], [1], [0, 0, 1, 1], [], []>} : vector<2x32xbf16>, vector<32x128xbf16>, vector<2x128xf32> -> vector<2x128xf32>
    %c0_35 = arith.constant 0 : index
    %c0_36 = arith.constant 0 : index
    %c0_37 = arith.constant 0 : index
    %94 = vector.load %arg5[%c0_35, %c0_36, %c0_37] : memref<1x1x128xf32, #tpu.memory_space<vmem>>, vector<1x1x128xf32>
    %95 = vector.shape_cast %94 : vector<1x1x128xf32> to vector<1x128xf32>
    %96 = vector.broadcast %95 : vector<1x128xf32> to vector<2x128xf32>
    %97 = arith.addf %93, %96 : vector<2x128xf32>
    %98 = arith.truncf %89 : vector<2x32xf32> to vector<2x32xbf16>
    %cst_38 = arith.constant dense<0.000000e+00> : vector<2x128xf32>
    %99 = tpu.matmul %98, %17, %cst_38 {dimension_numbers = #tpu.dot_dimension_numbers<[1], [0], [0], [1], [0, 0, 1, 1], [], []>} : vector<2x32xbf16>, vector<32x128xbf16>, vector<2x128xf32> -> vector<2x128xf32>
    %100 = arith.addf %10, %99 : vector<2x128xf32>
    %101 = arith.negf %100 : vector<2x128xf32>
    %102 = math.exp %101 : vector<2x128xf32>
    %cst_39 = arith.constant 1.000000e+00 : f32
    %103 = vector.broadcast %cst_39 : f32 to vector<2x128xf32>
    %104 = arith.addf %103, %102 : vector<2x128xf32>
    %105 = arith.divf %103, %104 : vector<2x128xf32>
    %106 = vector.extract_strided_slice %105 {offsets = [0, 0], sizes = [2, 32], strides = [1, 1]} : vector<2x128xf32> to vector<2x32xf32>
    %107 = vector.extract_strided_slice %105 {offsets = [0, 32], sizes = [2, 32], strides = [1, 1]} : vector<2x128xf32> to vector<2x32xf32>
    %108 = vector.extract_strided_slice %105 {offsets = [0, 96], sizes = [2, 32], strides = [1, 1]} : vector<2x128xf32> to vector<2x32xf32>
    %109 = vector.extract_strided_slice %100 {offsets = [0, 64], sizes = [2, 32], strides = [1, 1]} : vector<2x128xf32> to vector<2x32xf32>
    %110 = math.tanh %109 : vector<2x32xf32>
    %111 = arith.mulf %107, %87 : vector<2x32xf32>
    %112 = arith.mulf %106, %110 : vector<2x32xf32>
    %113 = arith.addf %111, %112 : vector<2x32xf32>
    %114 = math.tanh %113 : vector<2x32xf32>
    %115 = arith.mulf %108, %114 : vector<2x32xf32>
    %116 = arith.truncf %115 : vector<2x32xf32> to vector<2x32xbf16>
    %c0_40 = arith.constant 0 : index
    %c0_41 = arith.constant 0 : index
    %c0_42 = arith.constant 0 : index
    %117 = vector.load %arg3[%c0_40, %c0_41, %c0_42] : memref<1x32x128xbf16, #tpu.memory_space<vmem>>, vector<1x32x128xbf16>
    %118 = vector.shape_cast %117 : vector<1x32x128xbf16> to vector<32x128xbf16>
    %cst_43 = arith.constant dense<0.000000e+00> : vector<2x128xf32>
    %119 = tpu.matmul %116, %118, %cst_43 {dimension_numbers = #tpu.dot_dimension_numbers<[1], [0], [0], [1], [0, 0, 1, 1], [], []>} : vector<2x32xbf16>, vector<32x128xbf16>, vector<2x128xf32> -> vector<2x128xf32>
    %c0_44 = arith.constant 0 : index
    %c0_45 = arith.constant 0 : index
    %c0_46 = arith.constant 0 : index
    %120 = vector.load %arg5[%c0_44, %c0_45, %c0_46] : memref<1x1x128xf32, #tpu.memory_space<vmem>>, vector<1x1x128xf32>
    %121 = vector.shape_cast %120 : vector<1x1x128xf32> to vector<1x128xf32>
    %122 = vector.broadcast %121 : vector<1x128xf32> to vector<2x128xf32>
    %123 = arith.addf %119, %122 : vector<2x128xf32>
    %124 = arith.truncf %115 : vector<2x32xf32> to vector<2x32xbf16>
    %cst_47 = arith.constant dense<0.000000e+00> : vector<2x128xf32>
    %125 = tpu.matmul %124, %17, %cst_47 {dimension_numbers = #tpu.dot_dimension_numbers<[1], [0], [0], [1], [0, 0, 1, 1], [], []>} : vector<2x32xbf16>, vector<32x128xbf16>, vector<2x128xf32> -> vector<2x128xf32>
    %126 = arith.addf %11, %125 : vector<2x128xf32>
    %127 = arith.negf %126 : vector<2x128xf32>
    %128 = math.exp %127 : vector<2x128xf32>
    %cst_48 = arith.constant 1.000000e+00 : f32
    %129 = vector.broadcast %cst_48 : f32 to vector<2x128xf32>
    %130 = arith.addf %129, %128 : vector<2x128xf32>
    %131 = arith.divf %129, %130 : vector<2x128xf32>
    %132 = vector.extract_strided_slice %131 {offsets = [0, 0], sizes = [2, 32], strides = [1, 1]} : vector<2x128xf32> to vector<2x32xf32>
    %133 = vector.extract_strided_slice %131 {offsets = [0, 32], sizes = [2, 32], strides = [1, 1]} : vector<2x128xf32> to vector<2x32xf32>
    %134 = vector.extract_strided_slice %131 {offsets = [0, 96], sizes = [2, 32], strides = [1, 1]} : vector<2x128xf32> to vector<2x32xf32>
    %135 = vector.extract_strided_slice %126 {offsets = [0, 64], sizes = [2, 32], strides = [1, 1]} : vector<2x128xf32> to vector<2x32xf32>
    %136 = math.tanh %135 : vector<2x32xf32>
    %137 = arith.mulf %133, %113 : vector<2x32xf32>
    %138 = arith.mulf %132, %136 : vector<2x32xf32>
    %139 = arith.addf %137, %138 : vector<2x32xf32>
    %140 = math.tanh %139 : vector<2x32xf32>
    %141 = arith.mulf %134, %140 : vector<2x32xf32>
    %142 = arith.truncf %141 : vector<2x32xf32> to vector<2x32xbf16>
    %c0_49 = arith.constant 0 : index
    %c0_50 = arith.constant 0 : index
    %c0_51 = arith.constant 0 : index
    %143 = vector.load %arg3[%c0_49, %c0_50, %c0_51] : memref<1x32x128xbf16, #tpu.memory_space<vmem>>, vector<1x32x128xbf16>
    %144 = vector.shape_cast %143 : vector<1x32x128xbf16> to vector<32x128xbf16>
    %cst_52 = arith.constant dense<0.000000e+00> : vector<2x128xf32>
    %145 = tpu.matmul %142, %144, %cst_52 {dimension_numbers = #tpu.dot_dimension_numbers<[1], [0], [0], [1], [0, 0, 1, 1], [], []>} : vector<2x32xbf16>, vector<32x128xbf16>, vector<2x128xf32> -> vector<2x128xf32>
    %c0_53 = arith.constant 0 : index
    %c0_54 = arith.constant 0 : index
    %c0_55 = arith.constant 0 : index
    %146 = vector.load %arg5[%c0_53, %c0_54, %c0_55] : memref<1x1x128xf32, #tpu.memory_space<vmem>>, vector<1x1x128xf32>
    %147 = vector.shape_cast %146 : vector<1x1x128xf32> to vector<1x128xf32>
    %148 = vector.broadcast %147 : vector<1x128xf32> to vector<2x128xf32>
    %149 = arith.addf %145, %148 : vector<2x128xf32>
    %150 = arith.truncf %141 : vector<2x32xf32> to vector<2x32xbf16>
    %cst_56 = arith.constant dense<0.000000e+00> : vector<2x128xf32>
    %151 = tpu.matmul %150, %17, %cst_56 {dimension_numbers = #tpu.dot_dimension_numbers<[1], [0], [0], [1], [0, 0, 1, 1], [], []>} : vector<2x32xbf16>, vector<32x128xbf16>, vector<2x128xf32> -> vector<2x128xf32>
    %152 = arith.addf %12, %151 : vector<2x128xf32>
    %153 = arith.negf %152 : vector<2x128xf32>
    %154 = math.exp %153 : vector<2x128xf32>
    %cst_57 = arith.constant 1.000000e+00 : f32
    %155 = vector.broadcast %cst_57 : f32 to vector<2x128xf32>
    %156 = arith.addf %155, %154 : vector<2x128xf32>
    %157 = arith.divf %155, %156 : vector<2x128xf32>
    %158 = vector.extract_strided_slice %157 {offsets = [0, 0], sizes = [2, 32], strides = [1, 1]} : vector<2x128xf32> to vector<2x32xf32>
    %159 = vector.extract_strided_slice %157 {offsets = [0, 32], sizes = [2, 32], strides = [1, 1]} : vector<2x128xf32> to vector<2x32xf32>
    %160 = vector.extract_strided_slice %157 {offsets = [0, 96], sizes = [2, 32], strides = [1, 1]} : vector<2x128xf32> to vector<2x32xf32>
    %161 = vector.extract_strided_slice %152 {offsets = [0, 64], sizes = [2, 32], strides = [1, 1]} : vector<2x128xf32> to vector<2x32xf32>
    %162 = math.tanh %161 : vector<2x32xf32>
    %163 = arith.mulf %159, %139 : vector<2x32xf32>
    %164 = arith.mulf %158, %162 : vector<2x32xf32>
    %165 = arith.addf %163, %164 : vector<2x32xf32>
    %166 = math.tanh %165 : vector<2x32xf32>
    %167 = arith.mulf %160, %166 : vector<2x32xf32>
    %168 = arith.truncf %167 : vector<2x32xf32> to vector<2x32xbf16>
    %c0_58 = arith.constant 0 : index
    %c0_59 = arith.constant 0 : index
    %c0_60 = arith.constant 0 : index
    %169 = vector.load %arg3[%c0_58, %c0_59, %c0_60] : memref<1x32x128xbf16, #tpu.memory_space<vmem>>, vector<1x32x128xbf16>
    %170 = vector.shape_cast %169 : vector<1x32x128xbf16> to vector<32x128xbf16>
    %cst_61 = arith.constant dense<0.000000e+00> : vector<2x128xf32>
    %171 = tpu.matmul %168, %170, %cst_61 {dimension_numbers = #tpu.dot_dimension_numbers<[1], [0], [0], [1], [0, 0, 1, 1], [], []>} : vector<2x32xbf16>, vector<32x128xbf16>, vector<2x128xf32> -> vector<2x128xf32>
    %c0_62 = arith.constant 0 : index
    %c0_63 = arith.constant 0 : index
    %c0_64 = arith.constant 0 : index
    %172 = vector.load %arg5[%c0_62, %c0_63, %c0_64] : memref<1x1x128xf32, #tpu.memory_space<vmem>>, vector<1x1x128xf32>
    %173 = vector.shape_cast %172 : vector<1x1x128xf32> to vector<1x128xf32>
    %174 = vector.broadcast %173 : vector<1x128xf32> to vector<2x128xf32>
    %175 = arith.addf %171, %174 : vector<2x128xf32>
    %176 = arith.truncf %167 : vector<2x32xf32> to vector<2x32xbf16>
    %cst_65 = arith.constant dense<0.000000e+00> : vector<2x128xf32>
    %177 = tpu.matmul %176, %17, %cst_65 {dimension_numbers = #tpu.dot_dimension_numbers<[1], [0], [0], [1], [0, 0, 1, 1], [], []>} : vector<2x32xbf16>, vector<32x128xbf16>, vector<2x128xf32> -> vector<2x128xf32>
    %178 = arith.addf %13, %177 : vector<2x128xf32>
    %179 = arith.negf %178 : vector<2x128xf32>
    %180 = math.exp %179 : vector<2x128xf32>
    %cst_66 = arith.constant 1.000000e+00 : f32
    %181 = vector.broadcast %cst_66 : f32 to vector<2x128xf32>
    %182 = arith.addf %181, %180 : vector<2x128xf32>
    %183 = arith.divf %181, %182 : vector<2x128xf32>
    %184 = vector.extract_strided_slice %183 {offsets = [0, 0], sizes = [2, 32], strides = [1, 1]} : vector<2x128xf32> to vector<2x32xf32>
    %185 = vector.extract_strided_slice %183 {offsets = [0, 32], sizes = [2, 32], strides = [1, 1]} : vector<2x128xf32> to vector<2x32xf32>
    %186 = vector.extract_strided_slice %183 {offsets = [0, 96], sizes = [2, 32], strides = [1, 1]} : vector<2x128xf32> to vector<2x32xf32>
    %187 = vector.extract_strided_slice %178 {offsets = [0, 64], sizes = [2, 32], strides = [1, 1]} : vector<2x128xf32> to vector<2x32xf32>
    %188 = math.tanh %187 : vector<2x32xf32>
    %189 = arith.mulf %185, %165 : vector<2x32xf32>
    %190 = arith.mulf %184, %188 : vector<2x32xf32>
    %191 = arith.addf %189, %190 : vector<2x32xf32>
    %192 = math.tanh %191 : vector<2x32xf32>
    %193 = arith.mulf %186, %192 : vector<2x32xf32>
    %194 = arith.truncf %193 : vector<2x32xf32> to vector<2x32xbf16>
    %c0_67 = arith.constant 0 : index
    %c0_68 = arith.constant 0 : index
    %c0_69 = arith.constant 0 : index
    %195 = vector.load %arg3[%c0_67, %c0_68, %c0_69] : memref<1x32x128xbf16, #tpu.memory_space<vmem>>, vector<1x32x128xbf16>
    %196 = vector.shape_cast %195 : vector<1x32x128xbf16> to vector<32x128xbf16>
    %cst_70 = arith.constant dense<0.000000e+00> : vector<2x128xf32>
    %197 = tpu.matmul %194, %196, %cst_70 {dimension_numbers = #tpu.dot_dimension_numbers<[1], [0], [0], [1], [0, 0, 1, 1], [], []>} : vector<2x32xbf16>, vector<32x128xbf16>, vector<2x128xf32> -> vector<2x128xf32>
    %c0_71 = arith.constant 0 : index
    %c0_72 = arith.constant 0 : index
    %c0_73 = arith.constant 0 : index
    %198 = vector.load %arg5[%c0_71, %c0_72, %c0_73] : memref<1x1x128xf32, #tpu.memory_space<vmem>>, vector<1x1x128xf32>
    %199 = vector.shape_cast %198 : vector<1x1x128xf32> to vector<1x128xf32>
    %200 = vector.broadcast %199 : vector<1x128xf32> to vector<2x128xf32>
    %201 = arith.addf %197, %200 : vector<2x128xf32>
    %202 = arith.truncf %193 : vector<2x32xf32> to vector<2x32xbf16>
    %cst_74 = arith.constant dense<0.000000e+00> : vector<2x128xf32>
    %203 = tpu.matmul %202, %17, %cst_74 {dimension_numbers = #tpu.dot_dimension_numbers<[1], [0], [0], [1], [0, 0, 1, 1], [], []>} : vector<2x32xbf16>, vector<32x128xbf16>, vector<2x128xf32> -> vector<2x128xf32>
    %204 = arith.addf %14, %203 : vector<2x128xf32>
    %205 = arith.negf %204 : vector<2x128xf32>
    %206 = math.exp %205 : vector<2x128xf32>
    %cst_75 = arith.constant 1.000000e+00 : f32
    %207 = vector.broadcast %cst_75 : f32 to vector<2x128xf32>
    %208 = arith.addf %207, %206 : vector<2x128xf32>
    %209 = arith.divf %207, %208 : vector<2x128xf32>
    %210 = vector.extract_strided_slice %209 {offsets = [0, 0], sizes = [2, 32], strides = [1, 1]} : vector<2x128xf32> to vector<2x32xf32>
    %211 = vector.extract_strided_slice %209 {offsets = [0, 32], sizes = [2, 32], strides = [1, 1]} : vector<2x128xf32> to vector<2x32xf32>
    %212 = vector.extract_strided_slice %209 {offsets = [0, 96], sizes = [2, 32], strides = [1, 1]} : vector<2x128xf32> to vector<2x32xf32>
    %213 = vector.extract_strided_slice %204 {offsets = [0, 64], sizes = [2, 32], strides = [1, 1]} : vector<2x128xf32> to vector<2x32xf32>
    %214 = math.tanh %213 : vector<2x32xf32>
    %215 = arith.mulf %211, %191 : vector<2x32xf32>
    %216 = arith.mulf %210, %214 : vector<2x32xf32>
    %217 = arith.addf %215, %216 : vector<2x32xf32>
    %218 = math.tanh %217 : vector<2x32xf32>
    %219 = arith.mulf %212, %218 : vector<2x32xf32>
    %220 = arith.truncf %219 : vector<2x32xf32> to vector<2x32xbf16>
    %c0_76 = arith.constant 0 : index
    %c0_77 = arith.constant 0 : index
    %c0_78 = arith.constant 0 : index
    %221 = vector.load %arg3[%c0_76, %c0_77, %c0_78] : memref<1x32x128xbf16, #tpu.memory_space<vmem>>, vector<1x32x128xbf16>
    %222 = vector.shape_cast %221 : vector<1x32x128xbf16> to vector<32x128xbf16>
    %cst_79 = arith.constant dense<0.000000e+00> : vector<2x128xf32>
    %223 = tpu.matmul %220, %222, %cst_79 {dimension_numbers = #tpu.dot_dimension_numbers<[1], [0], [0], [1], [0, 0, 1, 1], [], []>} : vector<2x32xbf16>, vector<32x128xbf16>, vector<2x128xf32> -> vector<2x128xf32>
    %c0_80 = arith.constant 0 : index
    %c0_81 = arith.constant 0 : index
    %c0_82 = arith.constant 0 : index
    %224 = vector.load %arg5[%c0_80, %c0_81, %c0_82] : memref<1x1x128xf32, #tpu.memory_space<vmem>>, vector<1x1x128xf32>
    %225 = vector.shape_cast %224 : vector<1x1x128xf32> to vector<1x128xf32>
    %226 = vector.broadcast %225 : vector<1x128xf32> to vector<2x128xf32>
    %227 = arith.addf %223, %226 : vector<2x128xf32>
    %c1 = arith.constant 1 : index
    %c0_83 = arith.constant 0 : index
    %c0_84 = arith.constant 0 : index
    %228 = vector.load %arg4[%c1, %c0_83, %c0_84] : memref<2x32x128xbf16, #tpu.memory_space<vmem>>, vector<1x32x128xbf16>
    %229 = vector.shape_cast %228 : vector<1x32x128xbf16> to vector<32x128xbf16>
    %cst_85 = arith.constant 0.000000e+00 : f32
    %230 = vector.broadcast %cst_85 : f32 to vector<2x32xf32>
    %cst_86 = arith.constant 0.000000e+00 : f32
    %231 = vector.broadcast %cst_86 : f32 to vector<2x32xf32>
    %232 = arith.truncf %230 : vector<2x32xf32> to vector<2x32xbf16>
    %cst_87 = arith.constant dense<0.000000e+00> : vector<2x128xf32>
    %233 = tpu.matmul %232, %229, %cst_87 {dimension_numbers = #tpu.dot_dimension_numbers<[1], [0], [0], [1], [0, 0, 1, 1], [], []>} : vector<2x32xbf16>, vector<32x128xbf16>, vector<2x128xf32> -> vector<2x128xf32>
    %234 = arith.addf %45, %233 : vector<2x128xf32>
    %235 = arith.negf %234 : vector<2x128xf32>
    %236 = math.exp %235 : vector<2x128xf32>
    %cst_88 = arith.constant 1.000000e+00 : f32
    %237 = vector.broadcast %cst_88 : f32 to vector<2x128xf32>
    %238 = arith.addf %237, %236 : vector<2x128xf32>
    %239 = arith.divf %237, %238 : vector<2x128xf32>
    %240 = vector.extract_strided_slice %239 {offsets = [0, 0], sizes = [2, 32], strides = [1, 1]} : vector<2x128xf32> to vector<2x32xf32>
    %241 = vector.extract_strided_slice %239 {offsets = [0, 32], sizes = [2, 32], strides = [1, 1]} : vector<2x128xf32> to vector<2x32xf32>
    %242 = vector.extract_strided_slice %239 {offsets = [0, 96], sizes = [2, 32], strides = [1, 1]} : vector<2x128xf32> to vector<2x32xf32>
    %243 = vector.extract_strided_slice %234 {offsets = [0, 64], sizes = [2, 32], strides = [1, 1]} : vector<2x128xf32> to vector<2x32xf32>
    %244 = math.tanh %243 : vector<2x32xf32>
    %245 = arith.mulf %241, %231 : vector<2x32xf32>
    %246 = arith.mulf %240, %244 : vector<2x32xf32>
    %247 = arith.addf %245, %246 : vector<2x32xf32>
    %248 = math.tanh %247 : vector<2x32xf32>
    %249 = arith.mulf %242, %248 : vector<2x32xf32>
    %250 = arith.truncf %249 : vector<2x32xf32> to vector<2x32xbf16>
    %c0_89 = arith.constant 0 : index
    %c0_90 = arith.constant 0 : index
    %c0_91 = arith.constant 0 : index
    %251 = vector.load %arg6[%c0_89, %c0_90, %c0_91] : memref<8x32x2xbf16, #tpu.memory_space<vmem>>, vector<1x32x2xbf16>
    %252 = vector.shape_cast %251 : vector<1x32x2xbf16> to vector<32x2xbf16>
    %cst_92 = arith.constant dense<0.000000e+00> : vector<2x2xf32>
    %253 = tpu.matmul %250, %252, %cst_92 {dimension_numbers = #tpu.dot_dimension_numbers<[1], [0], [0], [1], [0, 0, 1, 1], [], []>} : vector<2x32xbf16>, vector<32x2xbf16>, vector<2x2xf32> -> vector<2x2xf32>
    %254 = arith.addf %15, %253 : vector<2x2xf32>
    %255 = arith.truncf %249 : vector<2x32xf32> to vector<2x32xbf16>
    %cst_93 = arith.constant dense<0.000000e+00> : vector<2x128xf32>
    %256 = tpu.matmul %255, %229, %cst_93 {dimension_numbers = #tpu.dot_dimension_numbers<[1], [0], [0], [1], [0, 0, 1, 1], [], []>} : vector<2x32xbf16>, vector<32x128xbf16>, vector<2x128xf32> -> vector<2x128xf32>
    %257 = arith.addf %71, %256 : vector<2x128xf32>
    %258 = arith.negf %257 : vector<2x128xf32>
    %259 = math.exp %258 : vector<2x128xf32>
    %cst_94 = arith.constant 1.000000e+00 : f32
    %260 = vector.broadcast %cst_94 : f32 to vector<2x128xf32>
    %261 = arith.addf %260, %259 : vector<2x128xf32>
    %262 = arith.divf %260, %261 : vector<2x128xf32>
    %263 = vector.extract_strided_slice %262 {offsets = [0, 0], sizes = [2, 32], strides = [1, 1]} : vector<2x128xf32> to vector<2x32xf32>
    %264 = vector.extract_strided_slice %262 {offsets = [0, 32], sizes = [2, 32], strides = [1, 1]} : vector<2x128xf32> to vector<2x32xf32>
    %265 = vector.extract_strided_slice %262 {offsets = [0, 96], sizes = [2, 32], strides = [1, 1]} : vector<2x128xf32> to vector<2x32xf32>
    %266 = vector.extract_strided_slice %257 {offsets = [0, 64], sizes = [2, 32], strides = [1, 1]} : vector<2x128xf32> to vector<2x32xf32>
    %267 = math.tanh %266 : vector<2x32xf32>
    %268 = arith.mulf %264, %247 : vector<2x32xf32>
    %269 = arith.mulf %263, %267 : vector<2x32xf32>
    %270 = arith.addf %268, %269 : vector<2x32xf32>
    %271 = math.tanh %270 : vector<2x32xf32>
    %272 = arith.mulf %265, %271 : vector<2x32xf32>
    %273 = arith.truncf %272 : vector<2x32xf32> to vector<2x32xbf16>
    %c1_95 = arith.constant 1 : index
    %c0_96 = arith.constant 0 : index
    %c0_97 = arith.constant 0 : index
    %274 = vector.load %arg6[%c1_95, %c0_96, %c0_97] : memref<8x32x2xbf16, #tpu.memory_space<vmem>>, vector<1x32x2xbf16>
    %275 = vector.shape_cast %274 : vector<1x32x2xbf16> to vector<32x2xbf16>
    %cst_98 = arith.constant dense<0.000000e+00> : vector<2x2xf32>
    %276 = tpu.matmul %273, %275, %cst_98 {dimension_numbers = #tpu.dot_dimension_numbers<[1], [0], [0], [1], [0, 0, 1, 1], [], []>} : vector<2x32xbf16>, vector<32x2xbf16>, vector<2x2xf32> -> vector<2x2xf32>
    %277 = arith.addf %254, %276 : vector<2x2xf32>
    %278 = arith.truncf %272 : vector<2x32xf32> to vector<2x32xbf16>
    %cst_99 = arith.constant dense<0.000000e+00> : vector<2x128xf32>
    %279 = tpu.matmul %278, %229, %cst_99 {dimension_numbers = #tpu.dot_dimension_numbers<[1], [0], [0], [1], [0, 0, 1, 1], [], []>} : vector<2x32xbf16>, vector<32x128xbf16>, vector<2x128xf32> -> vector<2x128xf32>
    %280 = arith.addf %97, %279 : vector<2x128xf32>
    %281 = arith.negf %280 : vector<2x128xf32>
    %282 = math.exp %281 : vector<2x128xf32>
    %cst_100 = arith.constant 1.000000e+00 : f32
    %283 = vector.broadcast %cst_100 : f32 to vector<2x128xf32>
    %284 = arith.addf %283, %282 : vector<2x128xf32>
    %285 = arith.divf %283, %284 : vector<2x128xf32>
    %286 = vector.extract_strided_slice %285 {offsets = [0, 0], sizes = [2, 32], strides = [1, 1]} : vector<2x128xf32> to vector<2x32xf32>
    %287 = vector.extract_strided_slice %285 {offsets = [0, 32], sizes = [2, 32], strides = [1, 1]} : vector<2x128xf32> to vector<2x32xf32>
    %288 = vector.extract_strided_slice %285 {offsets = [0, 96], sizes = [2, 32], strides = [1, 1]} : vector<2x128xf32> to vector<2x32xf32>
    %289 = vector.extract_strided_slice %280 {offsets = [0, 64], sizes = [2, 32], strides = [1, 1]} : vector<2x128xf32> to vector<2x32xf32>
    %290 = math.tanh %289 : vector<2x32xf32>
    %291 = arith.mulf %287, %270 : vector<2x32xf32>
    %292 = arith.mulf %286, %290 : vector<2x32xf32>
    %293 = arith.addf %291, %292 : vector<2x32xf32>
    %294 = math.tanh %293 : vector<2x32xf32>
    %295 = arith.mulf %288, %294 : vector<2x32xf32>
    %296 = arith.truncf %295 : vector<2x32xf32> to vector<2x32xbf16>
    %c2 = arith.constant 2 : index
    %c0_101 = arith.constant 0 : index
    %c0_102 = arith.constant 0 : index
    %297 = vector.load %arg6[%c2, %c0_101, %c0_102] : memref<8x32x2xbf16, #tpu.memory_space<vmem>>, vector<1x32x2xbf16>
    %298 = vector.shape_cast %297 : vector<1x32x2xbf16> to vector<32x2xbf16>
    %cst_103 = arith.constant dense<0.000000e+00> : vector<2x2xf32>
    %299 = tpu.matmul %296, %298, %cst_103 {dimension_numbers = #tpu.dot_dimension_numbers<[1], [0], [0], [1], [0, 0, 1, 1], [], []>} : vector<2x32xbf16>, vector<32x2xbf16>, vector<2x2xf32> -> vector<2x2xf32>
    %300 = arith.addf %277, %299 : vector<2x2xf32>
    %301 = arith.truncf %295 : vector<2x32xf32> to vector<2x32xbf16>
    %cst_104 = arith.constant dense<0.000000e+00> : vector<2x128xf32>
    %302 = tpu.matmul %301, %229, %cst_104 {dimension_numbers = #tpu.dot_dimension_numbers<[1], [0], [0], [1], [0, 0, 1, 1], [], []>} : vector<2x32xbf16>, vector<32x128xbf16>, vector<2x128xf32> -> vector<2x128xf32>
    %303 = arith.addf %123, %302 : vector<2x128xf32>
    %304 = arith.negf %303 : vector<2x128xf32>
    %305 = math.exp %304 : vector<2x128xf32>
    %cst_105 = arith.constant 1.000000e+00 : f32
    %306 = vector.broadcast %cst_105 : f32 to vector<2x128xf32>
    %307 = arith.addf %306, %305 : vector<2x128xf32>
    %308 = arith.divf %306, %307 : vector<2x128xf32>
    %309 = vector.extract_strided_slice %308 {offsets = [0, 0], sizes = [2, 32], strides = [1, 1]} : vector<2x128xf32> to vector<2x32xf32>
    %310 = vector.extract_strided_slice %308 {offsets = [0, 32], sizes = [2, 32], strides = [1, 1]} : vector<2x128xf32> to vector<2x32xf32>
    %311 = vector.extract_strided_slice %308 {offsets = [0, 96], sizes = [2, 32], strides = [1, 1]} : vector<2x128xf32> to vector<2x32xf32>
    %312 = vector.extract_strided_slice %303 {offsets = [0, 64], sizes = [2, 32], strides = [1, 1]} : vector<2x128xf32> to vector<2x32xf32>
    %313 = math.tanh %312 : vector<2x32xf32>
    %314 = arith.mulf %310, %293 : vector<2x32xf32>
    %315 = arith.mulf %309, %313 : vector<2x32xf32>
    %316 = arith.addf %314, %315 : vector<2x32xf32>
    %317 = math.tanh %316 : vector<2x32xf32>
    %318 = arith.mulf %311, %317 : vector<2x32xf32>
    %319 = arith.truncf %318 : vector<2x32xf32> to vector<2x32xbf16>
    %c3 = arith.constant 3 : index
    %c0_106 = arith.constant 0 : index
    %c0_107 = arith.constant 0 : index
    %320 = vector.load %arg6[%c3, %c0_106, %c0_107] : memref<8x32x2xbf16, #tpu.memory_space<vmem>>, vector<1x32x2xbf16>
    %321 = vector.shape_cast %320 : vector<1x32x2xbf16> to vector<32x2xbf16>
    %cst_108 = arith.constant dense<0.000000e+00> : vector<2x2xf32>
    %322 = tpu.matmul %319, %321, %cst_108 {dimension_numbers = #tpu.dot_dimension_numbers<[1], [0], [0], [1], [0, 0, 1, 1], [], []>} : vector<2x32xbf16>, vector<32x2xbf16>, vector<2x2xf32> -> vector<2x2xf32>
    %323 = arith.addf %300, %322 : vector<2x2xf32>
    %324 = arith.truncf %318 : vector<2x32xf32> to vector<2x32xbf16>
    %cst_109 = arith.constant dense<0.000000e+00> : vector<2x128xf32>
    %325 = tpu.matmul %324, %229, %cst_109 {dimension_numbers = #tpu.dot_dimension_numbers<[1], [0], [0], [1], [0, 0, 1, 1], [], []>} : vector<2x32xbf16>, vector<32x128xbf16>, vector<2x128xf32> -> vector<2x128xf32>
    %326 = arith.addf %149, %325 : vector<2x128xf32>
    %327 = arith.negf %326 : vector<2x128xf32>
    %328 = math.exp %327 : vector<2x128xf32>
    %cst_110 = arith.constant 1.000000e+00 : f32
    %329 = vector.broadcast %cst_110 : f32 to vector<2x128xf32>
    %330 = arith.addf %329, %328 : vector<2x128xf32>
    %331 = arith.divf %329, %330 : vector<2x128xf32>
    %332 = vector.extract_strided_slice %331 {offsets = [0, 0], sizes = [2, 32], strides = [1, 1]} : vector<2x128xf32> to vector<2x32xf32>
    %333 = vector.extract_strided_slice %331 {offsets = [0, 32], sizes = [2, 32], strides = [1, 1]} : vector<2x128xf32> to vector<2x32xf32>
    %334 = vector.extract_strided_slice %331 {offsets = [0, 96], sizes = [2, 32], strides = [1, 1]} : vector<2x128xf32> to vector<2x32xf32>
    %335 = vector.extract_strided_slice %326 {offsets = [0, 64], sizes = [2, 32], strides = [1, 1]} : vector<2x128xf32> to vector<2x32xf32>
    %336 = math.tanh %335 : vector<2x32xf32>
    %337 = arith.mulf %333, %316 : vector<2x32xf32>
    %338 = arith.mulf %332, %336 : vector<2x32xf32>
    %339 = arith.addf %337, %338 : vector<2x32xf32>
    %340 = math.tanh %339 : vector<2x32xf32>
    %341 = arith.mulf %334, %340 : vector<2x32xf32>
    %342 = arith.truncf %341 : vector<2x32xf32> to vector<2x32xbf16>
    %c4 = arith.constant 4 : index
    %c0_111 = arith.constant 0 : index
    %c0_112 = arith.constant 0 : index
    %343 = vector.load %arg6[%c4, %c0_111, %c0_112] : memref<8x32x2xbf16, #tpu.memory_space<vmem>>, vector<1x32x2xbf16>
    %344 = vector.shape_cast %343 : vector<1x32x2xbf16> to vector<32x2xbf16>
    %cst_113 = arith.constant dense<0.000000e+00> : vector<2x2xf32>
    %345 = tpu.matmul %342, %344, %cst_113 {dimension_numbers = #tpu.dot_dimension_numbers<[1], [0], [0], [1], [0, 0, 1, 1], [], []>} : vector<2x32xbf16>, vector<32x2xbf16>, vector<2x2xf32> -> vector<2x2xf32>
    %346 = arith.addf %323, %345 : vector<2x2xf32>
    %347 = arith.truncf %341 : vector<2x32xf32> to vector<2x32xbf16>
    %cst_114 = arith.constant dense<0.000000e+00> : vector<2x128xf32>
    %348 = tpu.matmul %347, %229, %cst_114 {dimension_numbers = #tpu.dot_dimension_numbers<[1], [0], [0], [1], [0, 0, 1, 1], [], []>} : vector<2x32xbf16>, vector<32x128xbf16>, vector<2x128xf32> -> vector<2x128xf32>
    %349 = arith.addf %175, %348 : vector<2x128xf32>
    %350 = arith.negf %349 : vector<2x128xf32>
    %351 = math.exp %350 : vector<2x128xf32>
    %cst_115 = arith.constant 1.000000e+00 : f32
    %352 = vector.broadcast %cst_115 : f32 to vector<2x128xf32>
    %353 = arith.addf %352, %351 : vector<2x128xf32>
    %354 = arith.divf %352, %353 : vector<2x128xf32>
    %355 = vector.extract_strided_slice %354 {offsets = [0, 0], sizes = [2, 32], strides = [1, 1]} : vector<2x128xf32> to vector<2x32xf32>
    %356 = vector.extract_strided_slice %354 {offsets = [0, 32], sizes = [2, 32], strides = [1, 1]} : vector<2x128xf32> to vector<2x32xf32>
    %357 = vector.extract_strided_slice %354 {offsets = [0, 96], sizes = [2, 32], strides = [1, 1]} : vector<2x128xf32> to vector<2x32xf32>
    %358 = vector.extract_strided_slice %349 {offsets = [0, 64], sizes = [2, 32], strides = [1, 1]} : vector<2x128xf32> to vector<2x32xf32>
    %359 = math.tanh %358 : vector<2x32xf32>
    %360 = arith.mulf %356, %339 : vector<2x32xf32>
    %361 = arith.mulf %355, %359 : vector<2x32xf32>
    %362 = arith.addf %360, %361 : vector<2x32xf32>
    %363 = math.tanh %362 : vector<2x32xf32>
    %364 = arith.mulf %357, %363 : vector<2x32xf32>
    %365 = arith.truncf %364 : vector<2x32xf32> to vector<2x32xbf16>
    %c5 = arith.constant 5 : index
    %c0_116 = arith.constant 0 : index
    %c0_117 = arith.constant 0 : index
    %366 = vector.load %arg6[%c5, %c0_116, %c0_117] : memref<8x32x2xbf16, #tpu.memory_space<vmem>>, vector<1x32x2xbf16>
    %367 = vector.shape_cast %366 : vector<1x32x2xbf16> to vector<32x2xbf16>
    %cst_118 = arith.constant dense<0.000000e+00> : vector<2x2xf32>
    %368 = tpu.matmul %365, %367, %cst_118 {dimension_numbers = #tpu.dot_dimension_numbers<[1], [0], [0], [1], [0, 0, 1, 1], [], []>} : vector<2x32xbf16>, vector<32x2xbf16>, vector<2x2xf32> -> vector<2x2xf32>
    %369 = arith.addf %346, %368 : vector<2x2xf32>
    %370 = arith.truncf %364 : vector<2x32xf32> to vector<2x32xbf16>
    %cst_119 = arith.constant dense<0.000000e+00> : vector<2x128xf32>
    %371 = tpu.matmul %370, %229, %cst_119 {dimension_numbers = #tpu.dot_dimension_numbers<[1], [0], [0], [1], [0, 0, 1, 1], [], []>} : vector<2x32xbf16>, vector<32x128xbf16>, vector<2x128xf32> -> vector<2x128xf32>
    %372 = arith.addf %201, %371 : vector<2x128xf32>
    %373 = arith.negf %372 : vector<2x128xf32>
    %374 = math.exp %373 : vector<2x128xf32>
    %cst_120 = arith.constant 1.000000e+00 : f32
    %375 = vector.broadcast %cst_120 : f32 to vector<2x128xf32>
    %376 = arith.addf %375, %374 : vector<2x128xf32>
    %377 = arith.divf %375, %376 : vector<2x128xf32>
    %378 = vector.extract_strided_slice %377 {offsets = [0, 0], sizes = [2, 32], strides = [1, 1]} : vector<2x128xf32> to vector<2x32xf32>
    %379 = vector.extract_strided_slice %377 {offsets = [0, 32], sizes = [2, 32], strides = [1, 1]} : vector<2x128xf32> to vector<2x32xf32>
    %380 = vector.extract_strided_slice %377 {offsets = [0, 96], sizes = [2, 32], strides = [1, 1]} : vector<2x128xf32> to vector<2x32xf32>
    %381 = vector.extract_strided_slice %372 {offsets = [0, 64], sizes = [2, 32], strides = [1, 1]} : vector<2x128xf32> to vector<2x32xf32>
    %382 = math.tanh %381 : vector<2x32xf32>
    %383 = arith.mulf %379, %362 : vector<2x32xf32>
    %384 = arith.mulf %378, %382 : vector<2x32xf32>
    %385 = arith.addf %383, %384 : vector<2x32xf32>
    %386 = math.tanh %385 : vector<2x32xf32>
    %387 = arith.mulf %380, %386 : vector<2x32xf32>
    %388 = arith.truncf %387 : vector<2x32xf32> to vector<2x32xbf16>
    %c6 = arith.constant 6 : index
    %c0_121 = arith.constant 0 : index
    %c0_122 = arith.constant 0 : index
    %389 = vector.load %arg6[%c6, %c0_121, %c0_122] : memref<8x32x2xbf16, #tpu.memory_space<vmem>>, vector<1x32x2xbf16>
    %390 = vector.shape_cast %389 : vector<1x32x2xbf16> to vector<32x2xbf16>
    %cst_123 = arith.constant dense<0.000000e+00> : vector<2x2xf32>
    %391 = tpu.matmul %388, %390, %cst_123 {dimension_numbers = #tpu.dot_dimension_numbers<[1], [0], [0], [1], [0, 0, 1, 1], [], []>} : vector<2x32xbf16>, vector<32x2xbf16>, vector<2x2xf32> -> vector<2x2xf32>
    %392 = arith.addf %369, %391 : vector<2x2xf32>
    %393 = arith.truncf %387 : vector<2x32xf32> to vector<2x32xbf16>
    %cst_124 = arith.constant dense<0.000000e+00> : vector<2x128xf32>
    %394 = tpu.matmul %393, %229, %cst_124 {dimension_numbers = #tpu.dot_dimension_numbers<[1], [0], [0], [1], [0, 0, 1, 1], [], []>} : vector<2x32xbf16>, vector<32x128xbf16>, vector<2x128xf32> -> vector<2x128xf32>
    %395 = arith.addf %227, %394 : vector<2x128xf32>
    %396 = arith.negf %395 : vector<2x128xf32>
    %397 = math.exp %396 : vector<2x128xf32>
    %cst_125 = arith.constant 1.000000e+00 : f32
    %398 = vector.broadcast %cst_125 : f32 to vector<2x128xf32>
    %399 = arith.addf %398, %397 : vector<2x128xf32>
    %400 = arith.divf %398, %399 : vector<2x128xf32>
    %401 = vector.extract_strided_slice %400 {offsets = [0, 0], sizes = [2, 32], strides = [1, 1]} : vector<2x128xf32> to vector<2x32xf32>
    %402 = vector.extract_strided_slice %400 {offsets = [0, 32], sizes = [2, 32], strides = [1, 1]} : vector<2x128xf32> to vector<2x32xf32>
    %403 = vector.extract_strided_slice %400 {offsets = [0, 96], sizes = [2, 32], strides = [1, 1]} : vector<2x128xf32> to vector<2x32xf32>
    %404 = vector.extract_strided_slice %395 {offsets = [0, 64], sizes = [2, 32], strides = [1, 1]} : vector<2x128xf32> to vector<2x32xf32>
    %405 = math.tanh %404 : vector<2x32xf32>
    %406 = arith.mulf %402, %385 : vector<2x32xf32>
    %407 = arith.mulf %401, %405 : vector<2x32xf32>
    %408 = arith.addf %406, %407 : vector<2x32xf32>
    %409 = math.tanh %408 : vector<2x32xf32>
    %410 = arith.mulf %403, %409 : vector<2x32xf32>
    %411 = arith.truncf %410 : vector<2x32xf32> to vector<2x32xbf16>
    %c7 = arith.constant 7 : index
    %c0_126 = arith.constant 0 : index
    %c0_127 = arith.constant 0 : index
    %412 = vector.load %arg6[%c7, %c0_126, %c0_127] : memref<8x32x2xbf16, #tpu.memory_space<vmem>>, vector<1x32x2xbf16>
    %413 = vector.shape_cast %412 : vector<1x32x2xbf16> to vector<32x2xbf16>
    %cst_128 = arith.constant dense<0.000000e+00> : vector<2x2xf32>
    %414 = tpu.matmul %411, %413, %cst_128 {dimension_numbers = #tpu.dot_dimension_numbers<[1], [0], [0], [1], [0, 0, 1, 1], [], []>} : vector<2x32xbf16>, vector<32x2xbf16>, vector<2x2xf32> -> vector<2x2xf32>
    %415 = arith.addf %392, %414 : vector<2x2xf32>
    %c0_129 = arith.constant 0 : index
    %c0_130 = arith.constant 0 : index
    %416 = vector.load %arg7[%c0_129, %c0_130] : memref<1x2xf32, #tpu.memory_space<vmem>>, vector<1x2xf32>
    %417 = vector.broadcast %416 : vector<1x2xf32> to vector<2x2xf32>
    %418 = arith.addf %415, %417 : vector<2x2xf32>
    %c0_131 = arith.constant 0 : index
    %c0_132 = arith.constant 0 : index
    %419 = vector.load %arg8[%c0_131, %c0_132] : memref<2x2xf32, #tpu.memory_space<vmem>>, vector<2x2xf32>
    tpu.vector_store %arg8[%c0_131, %c0_132], %418 {strides = array<i32>} : memref<2x2xf32, #tpu.memory_space<vmem>>, vector<2x2xf32>,
    return
  }
}

</mosaic_0001>

<llo_original>
// kernel: stacked_lstm_forward.1
$region0: #{stacked_lstm_forward.1}
  #allocation0 [shape = 'u32[]', space=smem, size = 0x4, offset = 0x4, fixed_abs, tag = 'smem constant byte address 0x4 - core index']
  #allocation1 [shape = 'u32[144,128]{1,0:T(1,128)}', space=vmem, size = 0x12000, scoped, tag = 'internal scratch']
  %s0 = inlined_call_operand.vmem [shape: f32[2,32], index: 0, kind: input, shape index: {}]
  %s1 = inlined_call_operand.vmem [shape: bf16[32,1024], index: 1, kind: input, shape index: {}]
  %s2 = inlined_call_operand.vmem [shape: f32[1,1024], index: 2, kind: input, shape index: {}]
  %s3 = inlined_call_operand.vmem [shape: bf16[1,32,128], index: 3, kind: input, shape index: {}]
  %s4 = inlined_call_operand.vmem [shape: bf16[2,32,128], index: 4, kind: input, shape index: {}]
  %s5 = inlined_call_operand.vmem [shape: f32[1,1,128], index: 5, kind: input, shape index: {}]
  %s6 = inlined_call_operand.vmem [shape: bf16[8,32,2], index: 6, kind: input, shape index: {}]
  %s7 = inlined_call_operand.vmem [shape: f32[1,2], index: 7, kind: input, shape index: {}]
  %s8 = inlined_call_operand.hbm [shape: f32[2,2], index: 8, kind: output, shape index: {}]
  %s9 = sld [smem:[#allocation0]]
  $region42: #{stacked_lstm_forward.1} parent=0
    _
  %s11 = ssub.s32 1, %s9
  %s12 = scalar_select 0, %s11, %s9
  $region1: #{stacked_lstm_forward.1} parent=0
    #allocation2 [shape = 'u8[1024]{0}', space=vmem, size = 0x400, scoped, tag = 'output window, operand 0, single buffered']
    #allocation3 [shape = 's32[1]{0}', space=sflag, size = 0x4, scoped, tag = 'scoped memory for stacked_lstm_forward.1']
    %13 = vsyncpa [#allocation3], 0
    // Predicated region
    $region2: #{stacked_lstm_forward.1} parent=1 // pred_check
      _
    $region3: #{stacked_lstm_forward.1} parent=1 // pred_check_branch
      %15 = sbr.rel (0) target = $region5
    $region4: #{stacked_lstm_forward.1} parent=1 // pred_region
      _
    $region5: #{stacked_lstm_forward.1} parent=1 // pred_fallthru
      _
    // Predicated region
    $region6: #{stacked_lstm_forward.1} parent=1 // pred_check
      _
    $region7: #{stacked_lstm_forward.1} parent=1 // pred_check_branch
      %17 = sbr.rel (0) target = $region9
    $region8: #{stacked_lstm_forward.1} parent=1 // pred_region
      _
    $region9: #{stacked_lstm_forward.1} parent=1 // pred_fallthru
      _
    // Predicated region
    $region10: #{stacked_lstm_forward.1} parent=1 // pred_check
      _
    $region11: #{stacked_lstm_forward.1} parent=1 // pred_check_branch
      %19 = sbr.rel (0) target = $region13
    $region12: #{stacked_lstm_forward.1} parent=1 // pred_region
      _
    $region13: #{stacked_lstm_forward.1} parent=1 // pred_fallthru
      _
    // Predicated region
    $region14: #{stacked_lstm_forward.1} parent=1 // pred_check
      _
    $region15: #{stacked_lstm_forward.1} parent=1 // pred_check_branch
      %21 = sbr.rel (0) target = $region17
    $region16: #{stacked_lstm_forward.1} parent=1 // pred_region
      _
    $region17: #{stacked_lstm_forward.1} parent=1 // pred_fallthru
      _
    // Predicated region
    $region18: #{stacked_lstm_forward.1} parent=1 // pred_check
      _
    $region19: #{stacked_lstm_forward.1} parent=1 // pred_check_branch
      %23 = sbr.rel (0) target = $region21
    $region20: #{stacked_lstm_forward.1} parent=1 // pred_region
      _
    $region21: #{stacked_lstm_forward.1} parent=1 // pred_fallthru
      _
    // Predicated region
    $region22: #{stacked_lstm_forward.1} parent=1 // pred_check
      _
    $region23: #{stacked_lstm_forward.1} parent=1 // pred_check_branch
      %25 = sbr.rel (0) target = $region25
    $region24: #{stacked_lstm_forward.1} parent=1 // pred_region
      _
    $region25: #{stacked_lstm_forward.1} parent=1 // pred_fallthru
      _
    // Predicated region
    $region26: #{stacked_lstm_forward.1} parent=1 // pred_check
      _
    $region27: #{stacked_lstm_forward.1} parent=1 // pred_check_branch
      %27 = sbr.rel (0) target = $region29
    $region28: #{stacked_lstm_forward.1} parent=1 // pred_region
      _
    $region29: #{stacked_lstm_forward.1} parent=1 // pred_fallthru
      _
    // Predicated region
    $region30: #{stacked_lstm_forward.1} parent=1 // pred_check
      _
    $region31: #{stacked_lstm_forward.1} parent=1 // pred_check_branch
      %29 = sbr.rel (0) target = $region33
    $region32: #{stacked_lstm_forward.1} parent=1 // pred_region
      _
    $region33: #{stacked_lstm_forward.1} parent=1 // pred_fallthru
      _
    %v31 = vld [vmem:[%s0] sm:$0x3]
    %v32 = vpack.c.bf16 %v31, %v31
    %v33 = vld [vmem:[%s1] sm:$0xff]
    %v34 = vld [vmem:[%s1 + $0x8] sm:$0xff]
    %v35 = vld [vmem:[%s1 + $0x10] sm:$0xff]
    %v36 = vld [vmem:[%s1 + $0x18] sm:$0xff]
    %v37 = vld [vmem:[%s1 + $0x20] sm:$0xff]
    %v38 = vld [vmem:[%s1 + $0x28] sm:$0xff]
    %v39 = vld [vmem:[%s1 + $0x30] sm:$0xff]
    %v40 = vld [vmem:[%s1 + $0x38] sm:$0xff]
    %v41 = vld [vmem:[%s1 + $0x40] sm:$0xff]
    %v42 = vld [vmem:[%s1 + $0x48] sm:$0xff]
    %v43 = vld [vmem:[%s1 + $0x50] sm:$0xff]
    %v44 = vld [vmem:[%s1 + $0x58] sm:$0xff]
    %v45 = vld [vmem:[%s1 + $0x60] sm:$0xff]
    %v46 = vld [vmem:[%s1 + $0x68] sm:$0xff]
    %v47 = vld [vmem:[%s1 + $0x70] sm:$0xff]
    %v48 = vld [vmem:[%s1 + $0x78] sm:$0xff]
    %v49 = vld [vmem:[%s2] sm:$0xff]
    %v51 = vlaneseq
    %v52 = vshrl.u32 %v51, 7
    %v53 = vsub.s32 0, %v52
    %v54 = vrot.slane %v49, %v53
    %v55 = vlaneseq
    %v56 = vshrl.u32 %v55, 7
    %v57 = vsub.s32 1, %v56
    %v58 = vrot.slane %v49, %v57
    %v59 = vlaneseq
    %v60 = vshrl.u32 %v59, 7
    %v61 = vsub.s32 2, %v60
    %v62 = vrot.slane %v49, %v61
    %v63 = vlaneseq
    %v64 = vshrl.u32 %v63, 7
    %v65 = vsub.s32 3, %v64
    %v66 = vrot.slane %v49, %v65
    %v67 = vlaneseq
    %v68 = vshrl.u32 %v67, 7
    %v69 = vsub.s32 4, %v68
    %v70 = vrot.slane %v49, %v69
    %v71 = vlaneseq
    %v72 = vshrl.u32 %v71, 7
    %v73 = vsub.s32 5, %v72
    %v74 = vrot.slane %v49, %v73
    %v75 = vlaneseq
    %v76 = vshrl.u32 %v75, 7
    %v77 = vsub.s32 6, %v76
    %v78 = vrot.slane %v49, %v77
    %v79 = vlaneseq
    %v80 = vshrl.u32 %v79, 7
    %v81 = vsub.s32 7, %v80
    %v82 = vrot.slane %v49, %v81
    %v107 = vunpack.c.l.b16 %v33
    %v108 = vunpack.c.h.b16 %v33
    %v109 = vunpack.c.l.b16 %v34
    %v110 = vunpack.c.h.b16 %v34
    %v111 = vunpack.c.l.b16 %v35
    %v112 = vunpack.c.h.b16 %v35
    %v113 = vunpack.c.l.b16 %v36
    %v114 = vunpack.c.h.b16 %v36
    %v115 = vunpack.c.l.b16 %v37
    %v116 = vunpack.c.h.b16 %v37
    %v117 = vunpack.c.l.b16 %v38
    %v118 = vunpack.c.h.b16 %v38
    %v119 = vunpack.c.l.b16 %v39
    %v120 = vunpack.c.h.b16 %v39
    %v121 = vunpack.c.l.b16 %v40
    %v122 = vunpack.c.h.b16 %v40
    %v123 = vunpack.c.l.b16 %v41
    %v124 = vunpack.c.h.b16 %v41
    %v125 = vunpack.c.l.b16 %v42
    %v126 = vunpack.c.h.b16 %v42
    %v127 = vunpack.c.l.b16 %v43
    %v128 = vunpack.c.h.b16 %v43
    %v129 = vunpack.c.l.b16 %v44
    %v130 = vunpack.c.h.b16 %v44
    %v131 = vunpack.c.l.b16 %v45
    %v132 = vunpack.c.h.b16 %v45
    %v133 = vunpack.c.l.b16 %v46
    %v134 = vunpack.c.h.b16 %v46
    %v135 = vunpack.c.l.b16 %v47
    %v136 = vunpack.c.h.b16 %v47
    %v137 = vunpack.c.l.b16 %v48
    %v138 = vunpack.c.h.b16 %v48
    %v139 = vpack.c.b16 %v115, %v107
    %v140 = vpack.c.b16 %v116, %v108
    %v141 = vpack.c.b16 %v117, %v109
    %v142 = vpack.c.b16 %v118, %v110
    %v143 = vpack.c.b16 %v119, %v111
    %v144 = vpack.c.b16 %v120, %v112
    %v145 = vpack.c.b16 %v121, %v113
    %v146 = vpack.c.b16 %v122, %v114
    %v147 = vpack.c.b16 %v131, %v123
    %v148 = vpack.c.b16 %v132, %v124
    %v149 = vpack.c.b16 %v133, %v125
    %v150 = vpack.c.b16 %v134, %v126
    %v151 = vpack.c.b16 %v135, %v127
    %v152 = vpack.c.b16 %v136, %v128
    %v153 = vpack.c.b16 %v137, %v129
    %v154 = vpack.c.b16 %v138, %v130
    %vm171 = vcmask 261120
    %v173 = vsel %vm171, %v32, 0
    %175 = vmatprep.subr.bf16.mxu0 %v140
    %176 = vmatpush1.bf16.msra.mxu0 %v139
    %177 = vmatprep.subr.bf16.mxu0 %v148
    %178 = vmatpush1.bf16.msra.mxu0 %v147
    %179 = vmatprep.subr.bf16.mxu0 0
    %180 = vmatpush1.bf16.msra.mxu0 0
    %181 = vmatprep.subr.bf16.mxu0 0
    %182 = vmatpush1.bf16.msra.mxu0 0
    %183 = vmatprep.subr.bf16.mxu0 0
    %184 = vmatpush1.bf16.msra.mxu0 0
    %185 = vmatprep.subr.bf16.mxu0 0
    %186 = vmatpush1.bf16.msra.mxu0 0
    %187 = vmatprep.subr.bf16.mxu0 0
    %188 = vmatpush1.bf16.msra.mxu0 0
    %189 = vmatprep.subr.bf16.mxu0 0
    %190 = vmatpush1.bf16.msra.mxu0 0
    %191 = vmatprep.subr.bf16.mxu0 0
    %192 = vmatpush1.bf16.msra.mxu0 0
    %193 = vmatprep.subr.bf16.mxu0 0
    %194 = vmatpush1.bf16.msra.mxu0 0
    %195 = vmatprep.subr.bf16.mxu0 0
    %196 = vmatpush1.bf16.msra.mxu0 0
    %197 = vmatprep.subr.bf16.mxu0 0
    %198 = vmatpush1.bf16.msra.mxu0 0
    %199 = vmatprep.subr.bf16.mxu0 0
    %200 = vmatpush1.bf16.msra.mxu0 0
    %201 = vmatprep.subr.bf16.mxu0 0
    %202 = vmatpush1.bf16.msra.mxu0 0
    %203 = vmatprep.subr.bf16.mxu0 0
    %204 = vmatpush1.bf16.msra.mxu0 0
    %205 = vmatprep.subr.bf16.mxu0 0
    %206 = vmatpush1.bf16.msra.mxu0 0
    %207 = vmatprep.mubr.bf16.mxu0 0
    %208 = vmatmul.mubr.bf16.gmra.mrb[0].mxu0 %v173
    %v209 = vpop.f32.mrb[0].mxu0
    %v210 = vadd.f32 %v54, %v209
    %v211 = vpop.f32.mrb[0].mxu0
    %v212 = vadd.f32 %v58, %v211
    %v213 = vpop.f32.mrb[0].mxu0
    %v214 = vpop.f32.mrb[0].mxu0
    %215 = vdwg.mxu0
    %216 = vmatprep.subr.bf16.mxu0 %v142
    %217 = vmatpush1.bf16.msra.mxu0 %v141
    %218 = vmatprep.subr.bf16.mxu0 %v150
    %219 = vmatpush1.bf16.msra.mxu0 %v149
    %220 = vmatprep.subr.bf16.mxu0 0
    %221 = vmatpush1.bf16.msra.mxu0 0
    %222 = vmatprep.subr.bf16.mxu0 0
    %223 = vmatpush1.bf16.msra.mxu0 0
    %224 = vmatprep.subr.bf16.mxu0 0
    %225 = vmatpush1.bf16.msra.mxu0 0
    %226 = vmatprep.subr.bf16.mxu0 0
    %227 = vmatpush1.bf16.msra.mxu0 0
    %228 = vmatprep.subr.bf16.mxu0 0
    %229 = vmatpush1.bf16.msra.mxu0 0
    %230 = vmatprep.subr.bf16.mxu0 0
    %231 = vmatpush1.bf16.msra.mxu0 0
    %232 = vmatprep.subr.bf16.mxu0 0
    %233 = vmatpush1.bf16.msra.mxu0 0
    %234 = vmatprep.subr.bf16.mxu0 0
    %235 = vmatpush1.bf16.msra.mxu0 0
    %236 = vmatprep.subr.bf16.mxu0 0
    %237 = vmatpush1.bf16.msra.mxu0 0
    %238 = vmatprep.subr.bf16.mxu0 0
    %239 = vmatpush1.bf16.msra.mxu0 0
    %240 = vmatprep.subr.bf16.mxu0 0
    %241 = vmatpush1.bf16.msra.mxu0 0
    %242 = vmatprep.subr.bf16.mxu0 0
    %243 = vmatpush1.bf16.msra.mxu0 0
    %244 = vmatprep.subr.bf16.mxu0 0
    %245 = vmatpush1.bf16.msra.mxu0 0
    %246 = vmatprep.subr.bf16.mxu0 0
    %247 = vmatpush1.bf16.msra.mxu0 0
    %248 = vmatprep.mubr.bf16.mxu0 0
    %249 = vmatmul.mubr.bf16.gmra.mrb[0].mxu0 %v173
    %v250 = vpop.f32.mrb[0].mxu0
    %v251 = vadd.f32 %v62, %v250
    %v252 = vpop.f32.mrb[0].mxu0
    %v253 = vadd.f32 %v66, %v252
    %v254 = vpop.f32.mrb[0].mxu0
    %v255 = vpop.f32.mrb[0].mxu0
    %256 = vdwg.mxu0
    %257 = vmatprep.subr.bf16.mxu0 %v144
    %258 = vmatpush1.bf16.msra.mxu0 %v143
    %259 = vmatprep.subr.bf16.mxu0 %v152
    %260 = vmatpush1.bf16.msra.mxu0 %v151
    %261 = vmatprep.subr.bf16.mxu0 0
    %262 = vmatpush1.bf16.msra.mxu0 0
    %263 = vmatprep.subr.bf16.mxu0 0
    %264 = vmatpush1.bf16.msra.mxu0 0
    %265 = vmatprep.subr.bf16.mxu0 0
    %266 = vmatpush1.bf16.msra.mxu0 0
    %267 = vmatprep.subr.bf16.mxu0 0
    %268 = vmatpush1.bf16.msra.mxu0 0
    %269 = vmatprep.subr.bf16.mxu0 0
    %270 = vmatpush1.bf16.msra.mxu0 0
    %271 = vmatprep.subr.bf16.mxu0 0
    %272 = vmatpush1.bf16.msra.mxu0 0
    %273 = vmatprep.subr.bf16.mxu0 0
    %274 = vmatpush1.bf16.msra.mxu0 0
    %275 = vmatprep.subr.bf16.mxu0 0
    %276 = vmatpush1.bf16.msra.mxu0 0
    %277 = vmatprep.subr.bf16.mxu0 0
    %278 = vmatpush1.bf16.msra.mxu0 0
    %279 = vmatprep.subr.bf16.mxu0 0
    %280 = vmatpush1.bf16.msra.mxu0 0
    %281 = vmatprep.subr.bf16.mxu0 0
    %282 = vmatpush1.bf16.msra.mxu0 0
    %283 = vmatprep.subr.bf16.mxu0 0
    %284 = vmatpush1.bf16.msra.mxu0 0
    %285 = vmatprep.subr.bf16.mxu0 0
    %286 = vmatpush1.bf16.msra.mxu0 0
    %287 = vmatprep.subr.bf16.mxu0 0
    %288 = vmatpush1.bf16.msra.mxu0 0
    %289 = vmatprep.mubr.bf16.mxu0 0
    %290 = vmatmul.mubr.bf16.gmra.mrb[0].mxu0 %v173
    %v291 = vpop.f32.mrb[0].mxu0
    %v292 = vadd.f32 %v70, %v291
    %v293 = vpop.f32.mrb[0].mxu0
    %v294 = vadd.f32 %v74, %v293
    %v295 = vpop.f32.mrb[0].mxu0
    %v296 = vpop.f32.mrb[0].mxu0
    %297 = vdwg.mxu0
    %298 = vmatprep.subr.bf16.mxu0 %v146
    %299 = vmatpush1.bf16.msra.mxu0 %v145
    %300 = vmatprep.subr.bf16.mxu0 %v154
    %301 = vmatpush1.bf16.msra.mxu0 %v153
    %302 = vmatprep.subr.bf16.mxu0 0
    %303 = vmatpush1.bf16.msra.mxu0 0
    %304 = vmatprep.subr.bf16.mxu0 0
    %305 = vmatpush1.bf16.msra.mxu0 0
    %306 = vmatprep.subr.bf16.mxu0 0
    %307 = vmatpush1.bf16.msra.mxu0 0
    %308 = vmatprep.subr.bf16.mxu0 0
    %309 = vmatpush1.bf16.msra.mxu0 0
    %310 = vmatprep.subr.bf16.mxu0 0
    %311 = vmatpush1.bf16.msra.mxu0 0
    %312 = vmatprep.subr.bf16.mxu0 0
    %313 = vmatpush1.bf16.msra.mxu0 0
    %314 = vmatprep.subr.bf16.mxu0 0
    %315 = vmatpush1.bf16.msra.mxu0 0
    %316 = vmatprep.subr.bf16.mxu0 0
    %317 = vmatpush1.bf16.msra.mxu0 0
    %318 = vmatprep.subr.bf16.mxu0 0
    %319 = vmatpush1.bf16.msra.mxu0 0
    %320 = vmatprep.subr.bf16.mxu0 0
    %321 = vmatpush1.bf16.msra.mxu0 0
    %322 = vmatprep.subr.bf16.mxu0 0
    %323 = vmatpush1.bf16.msra.mxu0 0
    %324 = vmatprep.subr.bf16.mxu0 0
    %325 = vmatpush1.bf16.msra.mxu0 0
    %326 = vmatprep.subr.bf16.mxu0 0
    %327 = vmatpush1.bf16.msra.mxu0 0
    %328 = vmatprep.subr.bf16.mxu0 0
    %329 = vmatpush1.bf16.msra.mxu0 0
    %330 = vmatprep.mubr.bf16.mxu0 0
    %331 = vmatmul.mubr.bf16.gmra.mrb[0].mxu0 %v173
    %v332 = vpop.f32.mrb[0].mxu0
    %v333 = vadd.f32 %v78, %v332
    %v334 = vpop.f32.mrb[0].mxu0
    %v335 = vadd.f32 %v82, %v334
    %v336 = vpop.f32.mrb[0].mxu0
    %v337 = vpop.f32.mrb[0].mxu0
    %338 = vdwg.mxu0
    %v339 = vld [vmem:[%s4] sm:$0xf]
    %v340 = vld [vmem:[%s4 + $0x4] sm:$0xf]
    %v341 = vld [vmem:[%s4 + $0x8] sm:$0xf]
    %v342 = vld [vmem:[%s4 + $0xc] sm:$0xf]
    %v347 = vunpack.c.l.b16 %v339
    %v348 = vunpack.c.l.b16 %v340
    %v349 = vunpack.c.l.b16 %v341
    %v350 = vunpack.c.l.b16 %v342
    %v351 = vpack.c.b16 %v348, %v347
    %v352 = vpack.c.b16 %v350, %v349
    %v356 = vsel %vm171, 0, 0
    %358 = vmatprep.subr.bf16.mxu0 0
    %359 = vmatpush1.bf16.msra.mxu0 %v351
    %360 = vmatprep.subr.bf16.mxu0 0
    %361 = vmatpush1.bf16.msra.mxu0 %v352
    %362 = vmatprep.subr.bf16.mxu0 0
    %363 = vmatpush1.bf16.msra.mxu0 0
    %364 = vmatprep.subr.bf16.mxu0 0
    %365 = vmatpush1.bf16.msra.mxu0 0
    %366 = vmatprep.subr.bf16.mxu0 0
    %367 = vmatpush1.bf16.msra.mxu0 0
    %368 = vmatprep.subr.bf16.mxu0 0
    %369 = vmatpush1.bf16.msra.mxu0 0
    %370 = vmatprep.subr.bf16.mxu0 0
    %371 = vmatpush1.bf16.msra.mxu0 0
    %372 = vmatprep.subr.bf16.mxu0 0
    %373 = vmatpush1.bf16.msra.mxu0 0
    %374 = vmatprep.subr.bf16.mxu0 0
    %375 = vmatpush1.bf16.msra.mxu0 0
    %376 = vmatprep.subr.bf16.mxu0 0
    %377 = vmatpush1.bf16.msra.mxu0 0
    %378 = vmatprep.subr.bf16.mxu0 0
    %379 = vmatpush1.bf16.msra.mxu0 0
    %380 = vmatprep.subr.bf16.mxu0 0
    %381 = vmatpush1.bf16.msra.mxu0 0
    %382 = vmatprep.subr.bf16.mxu0 0
    %383 = vmatpush1.bf16.msra.mxu0 0
    %384 = vmatprep.subr.bf16.mxu0 0
    %385 = vmatpush1.bf16.msra.mxu0 0
    %386 = vmatprep.subr.bf16.mxu0 0
    %387 = vmatpush1.bf16.msra.mxu0 0
    %388 = vmatprep.subr.bf16.mxu0 0
    %389 = vmatpush1.bf16.msra.mxu0 0
    %390 = vmatprep.mubr.bf16.mxu0 0
    %391 = vmatmul.mubr.bf16.gmra.mrb[0].mxu0 %v356
    %v392 = vpop.f32.mrb[0].mxu0
    %v393 = vadd.f32 0.0, %v392
    %v394 = vpop.f32.mrb[0].mxu0
    %v395 = vpop.f32.mrb[0].mxu0
    %v396 = vpop.f32.mrb[0].mxu0
    %397 = vdwg.mxu0
    %v398 = vadd.f32 %v210, %v393
    %v399 = vxor.u32 %v398, 2147483648
    %v400 = vmul.f32 %v399, 1.442695
    %v401 = vpow.pop %v400
    %v402 = vadd.f32 %v401, 1.0
    %v403 = vrcp.pop %v402
    %v404 = vmul.f32 1.0, %v403
    %v405 = vtanh.pop %v398
    %v406 = vmul.f32 %v404, 0.0
    %408 = vrot.lane.b32.xlu0 %v405, 64
    %v409 = vpop.permute.xlu0 %408
    %v411 = vmul.f32 %v404, %v409
    %413 = vrot.lane.b32.xlu0 %v411, 32
    %v414 = vpop.permute.xlu0 %413
    %v416 = vadd.f32 %v406, %v414
    %v417 = vtanh.pop %v416
    %419 = vrot.lane.b32.xlu0 %v417, 64
    %v420 = vpop.permute.xlu0 %419
    %v422 = vmul.f32 %v404, %v420
    %v423 = vpack.c.bf16 %v422, %v422
    %v424 = vld [vmem:[%s3] sm:$0xf]
    %v425 = vld [vmem:[%s3 + $0x4] sm:$0xf]
    %v426 = vld [vmem:[%s3 + $0x8] sm:$0xf]
    %v427 = vld [vmem:[%s3 + $0xc] sm:$0xf]
    %v428 = vld [vmem:[%s5] sm:$0x1]
    %v430 = vlaneseq
    %v431 = vshrl.u32 %v430, 7
    %v432 = vsub.s32 0, %v431
    %v433 = vrot.slane %v428, %v432
    %436 = vrot.lane.b32.xlu0 %v423, 32
    %v437 = vpop.permute.xlu0 %436
    %v442 = vunpack.c.l.b16 %v424
    %v443 = vunpack.c.l.b16 %v425
    %v444 = vunpack.c.l.b16 %v426
    %v445 = vunpack.c.l.b16 %v427
    %v446 = vpack.c.b16 %v443, %v442
    %v447 = vpack.c.b16 %v445, %v444
    %v451 = vsel %vm171, %v437, 0
    %453 = vmatprep.subr.bf16.mxu0 0
    %454 = vmatpush1.bf16.msra.mxu0 %v446
    %455 = vmatprep.subr.bf16.mxu0 0
    %456 = vmatpush1.bf16.msra.mxu0 %v447
    %457 = vmatprep.subr.bf16.mxu0 0
    %458 = vmatpush1.bf16.msra.mxu0 0
    %459 = vmatprep.subr.bf16.mxu0 0
    %460 = vmatpush1.bf16.msra.mxu0 0
    %461 = vmatprep.subr.bf16.mxu0 0
    %462 = vmatpush1.bf16.msra.mxu0 0
    %463 = vmatprep.subr.bf16.mxu0 0
    %464 = vmatpush1.bf16.msra.mxu0 0
    %465 = vmatprep.subr.bf16.mxu0 0
    %466 = vmatpush1.bf16.msra.mxu0 0
    %467 = vmatprep.subr.bf16.mxu0 0
    %468 = vmatpush1.bf16.msra.mxu0 0
    %469 = vmatprep.subr.bf16.mxu0 0
    %470 = vmatpush1.bf16.msra.mxu0 0
    %471 = vmatprep.subr.bf16.mxu0 0
    %472 = vmatpush1.bf16.msra.mxu0 0
    %473 = vmatprep.subr.bf16.mxu0 0
    %474 = vmatpush1.bf16.msra.mxu0 0
    %475 = vmatprep.subr.bf16.mxu0 0
    %476 = vmatpush1.bf16.msra.mxu0 0
    %477 = vmatprep.subr.bf16.mxu0 0
    %478 = vmatpush1.bf16.msra.mxu0 0
    %479 = vmatprep.subr.bf16.mxu0 0
    %480 = vmatpush1.bf16.msra.mxu0 0
    %481 = vmatprep.subr.bf16.mxu0 0
    %482 = vmatpush1.bf16.msra.mxu0 0
    %483 = vmatprep.subr.bf16.mxu0 0
    %484 = vmatpush1.bf16.msra.mxu0 0
    %485 = vmatprep.mubr.bf16.mxu0 0
    %486 = vmatmul.mubr.bf16.gmra.mrb[0].mxu0 %v451
    %v487 = vpop.f32.mrb[0].mxu0
    %v488 = vadd.f32 %v433, %v487
    %v489 = vpop.f32.mrb[0].mxu0
    %v490 = vpop.f32.mrb[0].mxu0
    %v491 = vpop.f32.mrb[0].mxu0
    %492 = vdwg.mxu0
    %493 = vmatprep.subr.bf16.mxu0 0
    %494 = vmatpush1.bf16.msra.mxu0 %v351
    %495 = vmatprep.subr.bf16.mxu0 0
    %496 = vmatpush1.bf16.msra.mxu0 %v352
    %497 = vmatprep.subr.bf16.mxu0 0
    %498 = vmatpush1.bf16.msra.mxu0 0
    %499 = vmatprep.subr.bf16.mxu0 0
    %500 = vmatpush1.bf16.msra.mxu0 0
    %501 = vmatprep.subr.bf16.mxu0 0
    %502 = vmatpush1.bf16.msra.mxu0 0
    %503 = vmatprep.subr.bf16.mxu0 0
    %504 = vmatpush1.bf16.msra.mxu0 0
    %505 = vmatprep.subr.bf16.mxu0 0
    %506 = vmatpush1.bf16.msra.mxu0 0
    %507 = vmatprep.subr.bf16.mxu0 0
    %508 = vmatpush1.bf16.msra.mxu0 0
    %509 = vmatprep.subr.bf16.mxu0 0
    %510 = vmatpush1.bf16.msra.mxu0 0
    %511 = vmatprep.subr.bf16.mxu0 0
    %512 = vmatpush1.bf16.msra.mxu0 0
    %513 = vmatprep.subr.bf16.mxu0 0
    %514 = vmatpush1.bf16.msra.mxu0 0
    %515 = vmatprep.subr.bf16.mxu0 0
    %516 = vmatpush1.bf16.msra.mxu0 0
    %517 = vmatprep.subr.bf16.mxu0 0
    %518 = vmatpush1.bf16.msra.mxu0 0
    %519 = vmatprep.subr.bf16.mxu0 0
    %520 = vmatpush1.bf16.msra.mxu0 0
    %521 = vmatprep.subr.bf16.mxu0 0
    %522 = vmatpush1.bf16.msra.mxu0 0
    %523 = vmatprep.subr.bf16.mxu0 0
    %524 = vmatpush1.bf16.msra.mxu0 0
    %525 = vmatprep.mubr.bf16.mxu0 0
    %526 = vmatmul.mubr.bf16.gmra.mrb[0].mxu0 %v451
    %v527 = vpop.f32.mrb[0].mxu0
    %v528 = vadd.f32 0.0, %v527
    %v529 = vpop.f32.mrb[0].mxu0
    %v530 = vpop.f32.mrb[0].mxu0
    %v531 = vpop.f32.mrb[0].mxu0
    %532 = vdwg.mxu0
    %v533 = vadd.f32 %v212, %v528
    %v534 = vxor.u32 %v533, 2147483648
    %v535 = vmul.f32 %v534, 1.442695
    %v536 = vpow.pop %v535
    %v537 = vadd.f32 %v536, 1.0
    %v538 = vrcp.pop %v537
    %v539 = vmul.f32 1.0, %v538
    %v540 = vtanh.pop %v533
    %v541 = vmul.f32 %v539, %v416
    %543 = vrot.lane.b32.xlu0 %v540, 64
    %v544 = vpop.permute.xlu0 %543
    %v546 = vmul.f32 %v539, %v544
    %548 = vrot.lane.b32.xlu0 %v546, 32
    %v549 = vpop.permute.xlu0 %548
    %v551 = vadd.f32 %v541, %v549
    %v552 = vtanh.pop %v551
    %554 = vrot.lane.b32.xlu0 %v552, 64
    %v555 = vpop.permute.xlu0 %554
    %v557 = vmul.f32 %v539, %v555
    %v558 = vpack.c.bf16 %v557, %v557
    %560 = vrot.lane.b32.xlu0 %v558, 32
    %v561 = vpop.permute.xlu0 %560
    %v563 = vsel %vm171, %v561, 0
    %565 = vmatprep.subr.bf16.mxu0 0
    %566 = vmatpush1.bf16.msra.mxu0 %v446
    %567 = vmatprep.subr.bf16.mxu0 0
    %568 = vmatpush1.bf16.msra.mxu0 %v447
    %569 = vmatprep.subr.bf16.mxu0 0
    %570 = vmatpush1.bf16.msra.mxu0 0
    %571 = vmatprep.subr.bf16.mxu0 0
    %572 = vmatpush1.bf16.msra.mxu0 0
    %573 = vmatprep.subr.bf16.mxu0 0
    %574 = vmatpush1.bf16.msra.mxu0 0
    %575 = vmatprep.subr.bf16.mxu0 0
    %576 = vmatpush1.bf16.msra.mxu0 0
    %577 = vmatprep.subr.bf16.mxu0 0
    %578 = vmatpush1.bf16.msra.mxu0 0
    %579 = vmatprep.subr.bf16.mxu0 0
    %580 = vmatpush1.bf16.msra.mxu0 0
    %581 = vmatprep.subr.bf16.mxu0 0
    %582 = vmatpush1.bf16.msra.mxu0 0
    %583 = vmatprep.subr.bf16.mxu0 0
    %584 = vmatpush1.bf16.msra.mxu0 0
    %585 = vmatprep.subr.bf16.mxu0 0
    %586 = vmatpush1.bf16.msra.mxu0 0
    %587 = vmatprep.subr.bf16.mxu0 0
    %588 = vmatpush1.bf16.msra.mxu0 0
    %589 = vmatprep.subr.bf16.mxu0 0
    %590 = vmatpush1.bf16.msra.mxu0 0
    %591 = vmatprep.subr.bf16.mxu0 0
    %592 = vmatpush1.bf16.msra.mxu0 0
    %593 = vmatprep.subr.bf16.mxu0 0
    %594 = vmatpush1.bf16.msra.mxu0 0
    %595 = vmatprep.subr.bf16.mxu0 0
    %596 = vmatpush1.bf16.msra.mxu0 0
    %597 = vmatprep.mubr.bf16.mxu0 0
    %598 = vmatmul.mubr.bf16.gmra.mrb[0].mxu0 %v563
    %v599 = vpop.f32.mrb[0].mxu0
    %v600 = vadd.f32 %v433, %v599
    %v601 = vpop.f32.mrb[0].mxu0
    %v602 = vpop.f32.mrb[0].mxu0
    %v603 = vpop.f32.mrb[0].mxu0
    %604 = vdwg.mxu0
    %605 = vmatprep.subr.bf16.mxu0 0
    %606 = vmatpush1.bf16.msra.mxu0 %v351
    %607 = vmatprep.subr.bf16.mxu0 0
    %608 = vmatpush1.bf16.msra.mxu0 %v352
    %609 = vmatprep.subr.bf16.mxu0 0
    %610 = vmatpush1.bf16.msra.mxu0 0
    %611 = vmatprep.subr.bf16.mxu0 0
    %612 = vmatpush1.bf16.msra.mxu0 0
    %613 = vmatprep.subr.bf16.mxu0 0
    %614 = vmatpush1.bf16.msra.mxu0 0
    %615 = vmatprep.subr.bf16.mxu0 0
    %616 = vmatpush1.bf16.msra.mxu0 0
    %617 = vmatprep.subr.bf16.mxu0 0
    %618 = vmatpush1.bf16.msra.mxu0 0
    %619 = vmatprep.subr.bf16.mxu0 0
    %620 = vmatpush1.bf16.msra.mxu0 0
    %621 = vmatprep.subr.bf16.mxu0 0
    %622 = vmatpush1.bf16.msra.mxu0 0
    %623 = vmatprep.subr.bf16.mxu0 0
    %624 = vmatpush1.bf16.msra.mxu0 0
    %625 = vmatprep.subr.bf16.mxu0 0
    %626 = vmatpush1.bf16.msra.mxu0 0
    %627 = vmatprep.subr.bf16.mxu0 0
    %628 = vmatpush1.bf16.msra.mxu0 0
    %629 = vmatprep.subr.bf16.mxu0 0
    %630 = vmatpush1.bf16.msra.mxu0 0
    %631 = vmatprep.subr.bf16.mxu0 0
    %632 = vmatpush1.bf16.msra.mxu0 0
    %633 = vmatprep.subr.bf16.mxu0 0
    %634 = vmatpush1.bf16.msra.mxu0 0
    %635 = vmatprep.subr.bf16.mxu0 0
    %636 = vmatpush1.bf16.msra.mxu0 0
    %637 = vmatprep.mubr.bf16.mxu0 0
    %638 = vmatmul.mubr.bf16.gmra.mrb[0].mxu0 %v563
    %v639 = vpop.f32.mrb[0].mxu0
    %v640 = vadd.f32 0.0, %v639
    %v641 = vpop.f32.mrb[0].mxu0
    %v642 = vpop.f32.mrb[0].mxu0
    %v643 = vpop.f32.mrb[0].mxu0
    %644 = vdwg.mxu0
    %v645 = vadd.f32 %v251, %v640
    %v646 = vxor.u32 %v645, 2147483648
    %v647 = vmul.f32 %v646, 1.442695
    %v648 = vpow.pop %v647
    %v649 = vadd.f32 %v648, 1.0
    %v650 = vrcp.pop %v649
    %v651 = vmul.f32 1.0, %v650
    %v652 = vtanh.pop %v645
    %v653 = vmul.f32 %v651, %v551
    %655 = vrot.lane.b32.xlu0 %v652, 64
    %v656 = vpop.permute.xlu0 %655
    %v658 = vmul.f32 %v651, %v656
    %660 = vrot.lane.b32.xlu0 %v658, 32
    %v661 = vpop.permute.xlu0 %660
    %v663 = vadd.f32 %v653, %v661
    %v664 = vtanh.pop %v663
    %666 = vrot.lane.b32.xlu0 %v664, 64
    %v667 = vpop.permute.xlu0 %666
    %v669 = vmul.f32 %v651, %v667
    %v670 = vpack.c.bf16 %v669, %v669
    %672 = vrot.lane.b32.xlu0 %v670, 32
    %v673 = vpop.permute.xlu0 %672
    %v675 = vsel %vm171, %v673, 0
    %677 = vmatprep.subr.bf16.mxu0 0
    %678 = vmatpush1.bf16.msra.mxu0 %v446
    %679 = vmatprep.subr.bf16.mxu0 0
    %680 = vmatpush1.bf16.msra.mxu0 %v447
    %681 = vmatprep.subr.bf16.mxu0 0
    %682 = vmatpush1.bf16.msra.mxu0 0
    %683 = vmatprep.subr.bf16.mxu0 0
    %684 = vmatpush1.bf16.msra.mxu0 0
    %685 = vmatprep.subr.bf16.mxu0 0
    %686 = vmatpush1.bf16.msra.mxu0 0
    %687 = vmatprep.subr.bf16.mxu0 0
    %688 = vmatpush1.bf16.msra.mxu0 0
    %689 = vmatprep.subr.bf16.mxu0 0
    %690 = vmatpush1.bf16.msra.mxu0 0
    %691 = vmatprep.subr.bf16.mxu0 0
    %692 = vmatpush1.bf16.msra.mxu0 0
    %693 = vmatprep.subr.bf16.mxu0 0
    %694 = vmatpush1.bf16.msra.mxu0 0
    %695 = vmatprep.subr.bf16.mxu0 0
    %696 = vmatpush1.bf16.msra.mxu0 0
    %697 = vmatprep.subr.bf16.mxu0 0
    %698 = vmatpush1.bf16.msra.mxu0 0
    %699 = vmatprep.subr.bf16.mxu0 0
    %700 = vmatpush1.bf16.msra.mxu0 0
    %701 = vmatprep.subr.bf16.mxu0 0
    %702 = vmatpush1.bf16.msra.mxu0 0
    %703 = vmatprep.subr.bf16.mxu0 0
    %704 = vmatpush1.bf16.msra.mxu0 0
    %705 = vmatprep.subr.bf16.mxu0 0
    %706 = vmatpush1.bf16.msra.mxu0 0
    %707 = vmatprep.subr.bf16.mxu0 0
    %708 = vmatpush1.bf16.msra.mxu0 0
    %709 = vmatprep.mubr.bf16.mxu0 0
    %710 = vmatmul.mubr.bf16.gmra.mrb[0].mxu0 %v675
    %v711 = vpop.f32.mrb[0].mxu0
    %v712 = vadd.f32 %v433, %v711
    %v713 = vpop.f32.mrb[0].mxu0
    %v714 = vpop.f32.mrb[0].mxu0
    %v715 = vpop.f32.mrb[0].mxu0
    %716 = vdwg.mxu0
    %717 = vmatprep.subr.bf16.mxu0 0
    %718 = vmatpush1.bf16.msra.mxu0 %v351
    %719 = vmatprep.subr.bf16.mxu0 0
    %720 = vmatpush1.bf16.msra.mxu0 %v352
    %721 = vmatprep.subr.bf16.mxu0 0
    %722 = vmatpush1.bf16.msra.mxu0 0
    %723 = vmatprep.subr.bf16.mxu0 0
    %724 = vmatpush1.bf16.msra.mxu0 0
    %725 = vmatprep.subr.bf16.mxu0 0
    %726 = vmatpush1.bf16.msra.mxu0 0
    %727 = vmatprep.subr.bf16.mxu0 0
    %728 = vmatpush1.bf16.msra.mxu0 0
    %729 = vmatprep.subr.bf16.mxu0 0
    %730 = vmatpush1.bf16.msra.mxu0 0
    %731 = vmatprep.subr.bf16.mxu0 0
    %732 = vmatpush1.bf16.msra.mxu0 0
    %733 = vmatprep.subr.bf16.mxu0 0
    %734 = vmatpush1.bf16.msra.mxu0 0
    %735 = vmatprep.subr.bf16.mxu0 0
    %736 = vmatpush1.bf16.msra.mxu0 0
    %737 = vmatprep.subr.bf16.mxu0 0
    %738 = vmatpush1.bf16.msra.mxu0 0
    %739 = vmatprep.subr.bf16.mxu0 0
    %740 = vmatpush1.bf16.msra.mxu0 0
    %741 = vmatprep.subr.bf16.mxu0 0
    %742 = vmatpush1.bf16.msra.mxu0 0
    %743 = vmatprep.subr.bf16.mxu0 0
    %744 = vmatpush1.bf16.msra.mxu0 0
    %745 = vmatprep.subr.bf16.mxu0 0
    %746 = vmatpush1.bf16.msra.mxu0 0
    %747 = vmatprep.subr.bf16.mxu0 0
    %748 = vmatpush1.bf16.msra.mxu0 0
    %749 = vmatprep.mubr.bf16.mxu0 0
    %750 = vmatmul.mubr.bf16.gmra.mrb[0].mxu0 %v675
    %v751 = vpop.f32.mrb[0].mxu0
    %v752 = vadd.f32 0.0, %v751
    %v753 = vpop.f32.mrb[0].mxu0
    %v754 = vpop.f32.mrb[0].mxu0
    %v755 = vpop.f32.mrb[0].mxu0
    %756 = vdwg.mxu0
    %v757 = vadd.f32 %v253, %v752
    %v758 = vxor.u32 %v757, 2147483648
    %v759 = vmul.f32 %v758, 1.442695
    %v760 = vpow.pop %v759
    %v761 = vadd.f32 %v760, 1.0
    %v762 = vrcp.pop %v761
    %v763 = vmul.f32 1.0, %v762
    %v764 = vtanh.pop %v757
    %v765 = vmul.f32 %v763, %v663
    %767 = vrot.lane.b32.xlu0 %v764, 64
    %v768 = vpop.permute.xlu0 %767
    %v770 = vmul.f32 %v763, %v768
    %772 = vrot.lane.b32.xlu0 %v770, 32
    %v773 = vpop.permute.xlu0 %772
    %v775 = vadd.f32 %v765, %v773
    %v776 = vtanh.pop %v775
    %778 = vrot.lane.b32.xlu0 %v776, 64
    %v779 = vpop.permute.xlu0 %778
    %v781 = vmul.f32 %v763, %v779
    %v782 = vpack.c.bf16 %v781, %v781
    %784 = vrot.lane.b32.xlu0 %v782, 32
    %v785 = vpop.permute.xlu0 %784
    %v787 = vsel %vm171, %v785, 0
    %789 = vmatprep.subr.bf16.mxu0 0
    %790 = vmatpush1.bf16.msra.mxu0 %v446
    %791 = vmatprep.subr.bf16.mxu0 0
    %792 = vmatpush1.bf16.msra.mxu0 %v447
    %793 = vmatprep.subr.bf16.mxu0 0
    %794 = vmatpush1.bf16.msra.mxu0 0
    %795 = vmatprep.subr.bf16.mxu0 0
    %796 = vmatpush1.bf16.msra.mxu0 0
    %797 = vmatprep.subr.bf16.mxu0 0
    %798 = vmatpush1.bf16.msra.mxu0 0
    %799 = vmatprep.subr.bf16.mxu0 0
    %800 = vmatpush1.bf16.msra.mxu0 0
    %801 = vmatprep.subr.bf16.mxu0 0
    %802 = vmatpush1.bf16.msra.mxu0 0
    %803 = vmatprep.subr.bf16.mxu0 0
    %804 = vmatpush1.bf16.msra.mxu0 0
    %805 = vmatprep.subr.bf16.mxu0 0
    %806 = vmatpush1.bf16.msra.mxu0 0
    %807 = vmatprep.subr.bf16.mxu0 0
    %808 = vmatpush1.bf16.msra.mxu0 0
    %809 = vmatprep.subr.bf16.mxu0 0
    %810 = vmatpush1.bf16.msra.mxu0 0
    %811 = vmatprep.subr.bf16.mxu0 0
    %812 = vmatpush1.bf16.msra.mxu0 0
    %813 = vmatprep.subr.bf16.mxu0 0
    %814 = vmatpush1.bf16.msra.mxu0 0
    %815 = vmatprep.subr.bf16.mxu0 0
    %816 = vmatpush1.bf16.msra.mxu0 0
    %817 = vmatprep.subr.bf16.mxu0 0
    %818 = vmatpush1.bf16.msra.mxu0 0
    %819 = vmatprep.subr.bf16.mxu0 0
    %820 = vmatpush1.bf16.msra.mxu0 0
    %821 = vmatprep.mubr.bf16.mxu0 0
    %822 = vmatmul.mubr.bf16.gmra.mrb[0].mxu0 %v787
    %v823 = vpop.f32.mrb[0].mxu0
    %v824 = vadd.f32 %v433, %v823
    %v825 = vpop.f32.mrb[0].mxu0
    %v826 = vpop.f32.mrb[0].mxu0
    %v827 = vpop.f32.mrb[0].mxu0
    %828 = vdwg.mxu0
    %829 = vmatprep.subr.bf16.mxu0 0
    %830 = vmatpush1.bf16.msra.mxu0 %v351
    %831 = vmatprep.subr.bf16.mxu0 0
    %832 = vmatpush1.bf16.msra.mxu0 %v352
    %833 = vmatprep.subr.bf16.mxu0 0
    %834 = vmatpush1.bf16.msra.mxu0 0
    %835 = vmatprep.subr.bf16.mxu0 0
    %836 = vmatpush1.bf16.msra.mxu0 0
    %837 = vmatprep.subr.bf16.mxu0 0
    %838 = vmatpush1.bf16.msra.mxu0 0
    %839 = vmatprep.subr.bf16.mxu0 0
    %840 = vmatpush1.bf16.msra.mxu0 0
    %841 = vmatprep.subr.bf16.mxu0 0
    %842 = vmatpush1.bf16.msra.mxu0 0
    %843 = vmatprep.subr.bf16.mxu0 0
    %844 = vmatpush1.bf16.msra.mxu0 0
    %845 = vmatprep.subr.bf16.mxu0 0
    %846 = vmatpush1.bf16.msra.mxu0 0
    %847 = vmatprep.subr.bf16.mxu0 0
    %848 = vmatpush1.bf16.msra.mxu0 0
    %849 = vmatprep.subr.bf16.mxu0 0
    %850 = vmatpush1.bf16.msra.mxu0 0
    %851 = vmatprep.subr.bf16.mxu0 0
    %852 = vmatpush1.bf16.msra.mxu0 0
    %853 = vmatprep.subr.bf16.mxu0 0
    %854 = vmatpush1.bf16.msra.mxu0 0
    %855 = vmatprep.subr.bf16.mxu0 0
    %856 = vmatpush1.bf16.msra.mxu0 0
    %857 = vmatprep.subr.bf16.mxu0 0
    %858 = vmatpush1.bf16.msra.mxu0 0
    %859 = vmatprep.subr.bf16.mxu0 0
    %860 = vmatpush1.bf16.msra.mxu0 0
    %861 = vmatprep.mubr.bf16.mxu0 0
    %862 = vmatmul.mubr.bf16.gmra.mrb[0].mxu0 %v787
    %v863 = vpop.f32.mrb[0].mxu0
    %v864 = vadd.f32 0.0, %v863
    %v865 = vpop.f32.mrb[0].mxu0
    %v866 = vpop.f32.mrb[0].mxu0
    %v867 = vpop.f32.mrb[0].mxu0
    %868 = vdwg.mxu0
    %v869 = vadd.f32 %v292, %v864
    %v870 = vxor.u32 %v869, 2147483648
    %v871 = vmul.f32 %v870, 1.442695
    %v872 = vpow.pop %v871
    %v873 = vadd.f32 %v872, 1.0
    %v874 = vrcp.pop %v873
    %v875 = vmul.f32 1.0, %v874
    %v876 = vtanh.pop %v869
    %v877 = vmul.f32 %v875, %v775
    %879 = vrot.lane.b32.xlu0 %v876, 64
    %v880 = vpop.permute.xlu0 %879
    %v882 = vmul.f32 %v875, %v880
    %884 = vrot.lane.b32.xlu0 %v882, 32
    %v885 = vpop.permute.xlu0 %884
    %v887 = vadd.f32 %v877, %v885
    %v888 = vtanh.pop %v887
    %890 = vrot.lane.b32.xlu0 %v888, 64
    %v891 = vpop.permute.xlu0 %890
    %v893 = vmul.f32 %v875, %v891
    %v894 = vpack.c.bf16 %v893, %v893
    %896 = vrot.lane.b32.xlu0 %v894, 32
    %v897 = vpop.permute.xlu0 %896
    %v899 = vsel %vm171, %v897, 0
    %901 = vmatprep.subr.bf16.mxu0 0
    %902 = vmatpush1.bf16.msra.mxu0 %v446
    %903 = vmatprep.subr.bf16.mxu0 0
    %904 = vmatpush1.bf16.msra.mxu0 %v447
    %905 = vmatprep.subr.bf16.mxu0 0
    %906 = vmatpush1.bf16.msra.mxu0 0
    %907 = vmatprep.subr.bf16.mxu0 0
    %908 = vmatpush1.bf16.msra.mxu0 0
    %909 = vmatprep.subr.bf16.mxu0 0
    %910 = vmatpush1.bf16.msra.mxu0 0
    %911 = vmatprep.subr.bf16.mxu0 0
    %912 = vmatpush1.bf16.msra.mxu0 0
    %913 = vmatprep.subr.bf16.mxu0 0
    %914 = vmatpush1.bf16.msra.mxu0 0
    %915 = vmatprep.subr.bf16.mxu0 0
    %916 = vmatpush1.bf16.msra.mxu0 0
    %917 = vmatprep.subr.bf16.mxu0 0
    %918 = vmatpush1.bf16.msra.mxu0 0
    %919 = vmatprep.subr.bf16.mxu0 0
    %920 = vmatpush1.bf16.msra.mxu0 0
    %921 = vmatprep.subr.bf16.mxu0 0
    %922 = vmatpush1.bf16.msra.mxu0 0
    %923 = vmatprep.subr.bf16.mxu0 0
    %924 = vmatpush1.bf16.msra.mxu0 0
    %925 = vmatprep.subr.bf16.mxu0 0
    %926 = vmatpush1.bf16.msra.mxu0 0
    %927 = vmatprep.subr.bf16.mxu0 0
    %928 = vmatpush1.bf16.msra.mxu0 0
    %929 = vmatprep.subr.bf16.mxu0 0
    %930 = vmatpush1.bf16.msra.mxu0 0
    %931 = vmatprep.subr.bf16.mxu0 0
    %932 = vmatpush1.bf16.msra.mxu0 0
    %933 = vmatprep.mubr.bf16.mxu0 0
    %934 = vmatmul.mubr.bf16.gmra.mrb[0].mxu0 %v899
    %v935 = vpop.f32.mrb[0].mxu0
    %v936 = vadd.f32 %v433, %v935
    %v937 = vpop.f32.mrb[0].mxu0
    %v938 = vpop.f32.mrb[0].mxu0
    %v939 = vpop.f32.mrb[0].mxu0
    %940 = vdwg.mxu0
    %941 = vmatprep.subr.bf16.mxu0 0
    %942 = vmatpush1.bf16.msra.mxu0 %v351
    %943 = vmatprep.subr.bf16.mxu0 0
    %944 = vmatpush1.bf16.msra.mxu0 %v352
    %945 = vmatprep.subr.bf16.mxu0 0
    %946 = vmatpush1.bf16.msra.mxu0 0
    %947 = vmatprep.subr.bf16.mxu0 0
    %948 = vmatpush1.bf16.msra.mxu0 0
    %949 = vmatprep.subr.bf16.mxu0 0
    %950 = vmatpush1.bf16.msra.mxu0 0
    %951 = vmatprep.subr.bf16.mxu0 0
    %952 = vmatpush1.bf16.msra.mxu0 0
    %953 = vmatprep.subr.bf16.mxu0 0
    %954 = vmatpush1.bf16.msra.mxu0 0
    %955 = vmatprep.subr.bf16.mxu0 0
    %956 = vmatpush1.bf16.msra.mxu0 0
    %957 = vmatprep.subr.bf16.mxu0 0
    %958 = vmatpush1.bf16.msra.mxu0 0
    %959 = vmatprep.subr.bf16.mxu0 0
    %960 = vmatpush1.bf16.msra.mxu0 0
    %961 = vmatprep.subr.bf16.mxu0 0
    %962 = vmatpush1.bf16.msra.mxu0 0
    %963 = vmatprep.subr.bf16.mxu0 0
    %964 = vmatpush1.bf16.msra.mxu0 0
    %965 = vmatprep.subr.bf16.mxu0 0
    %966 = vmatpush1.bf16.msra.mxu0 0
    %967 = vmatprep.subr.bf16.mxu0 0
    %968 = vmatpush1.bf16.msra.mxu0 0
    %969 = vmatprep.subr.bf16.mxu0 0
    %970 = vmatpush1.bf16.msra.mxu0 0
    %971 = vmatprep.subr.bf16.mxu0 0
    %972 = vmatpush1.bf16.msra.mxu0 0
    %973 = vmatprep.mubr.bf16.mxu0 0
    %974 = vmatmul.mubr.bf16.gmra.mrb[0].mxu0 %v899
    %v975 = vpop.f32.mrb[0].mxu0
    %v976 = vadd.f32 0.0, %v975
    %v977 = vpop.f32.mrb[0].mxu0
    %v978 = vpop.f32.mrb[0].mxu0
    %v979 = vpop.f32.mrb[0].mxu0
    %980 = vdwg.mxu0
    %v981 = vadd.f32 %v294, %v976
    %v982 = vxor.u32 %v981, 2147483648
    %v983 = vmul.f32 %v982, 1.442695
    %v984 = vpow.pop %v983
    %v985 = vadd.f32 %v984, 1.0
    %v986 = vrcp.pop %v985
    %v987 = vmul.f32 1.0, %v986
    %v988 = vtanh.pop %v981
    %v989 = vmul.f32 %v987, %v887
    %991 = vrot.lane.b32.xlu0 %v988, 64
    %v992 = vpop.permute.xlu0 %991
    %v994 = vmul.f32 %v987, %v992
    %996 = vrot.lane.b32.xlu0 %v994, 32
    %v997 = vpop.permute.xlu0 %996
    %v999 = vadd.f32 %v989, %v997
    %v1000 = vtanh.pop %v999
    %1002 = vrot.lane.b32.xlu0 %v1000, 64
    %v1003 = vpop.permute.xlu0 %1002
    %v1005 = vmul.f32 %v987, %v1003
    %v1006 = vpack.c.bf16 %v1005, %v1005
    %1008 = vrot.lane.b32.xlu0 %v1006, 32
    %v1009 = vpop.permute.xlu0 %1008
    %v1011 = vsel %vm171, %v1009, 0
    %1013 = vmatprep.subr.bf16.mxu0 0
    %1014 = vmatpush1.bf16.msra.mxu0 %v446
    %1015 = vmatprep.subr.bf16.mxu0 0
    %1016 = vmatpush1.bf16.msra.mxu0 %v447
    %1017 = vmatprep.subr.bf16.mxu0 0
    %1018 = vmatpush1.bf16.msra.mxu0 0
    %1019 = vmatprep.subr.bf16.mxu0 0
    %1020 = vmatpush1.bf16.msra.mxu0 0
    %1021 = vmatprep.subr.bf16.mxu0 0
    %1022 = vmatpush1.bf16.msra.mxu0 0
    %1023 = vmatprep.subr.bf16.mxu0 0
    %1024 = vmatpush1.bf16.msra.mxu0 0
    %1025 = vmatprep.subr.bf16.mxu0 0
    %1026 = vmatpush1.bf16.msra.mxu0 0
    %1027 = vmatprep.subr.bf16.mxu0 0
    %1028 = vmatpush1.bf16.msra.mxu0 0
    %1029 = vmatprep.subr.bf16.mxu0 0
    %1030 = vmatpush1.bf16.msra.mxu0 0
    %1031 = vmatprep.subr.bf16.mxu0 0
    %1032 = vmatpush1.bf16.msra.mxu0 0
    %1033 = vmatprep.subr.bf16.mxu0 0
    %1034 = vmatpush1.bf16.msra.mxu0 0
    %1035 = vmatprep.subr.bf16.mxu0 0
    %1036 = vmatpush1.bf16.msra.mxu0 0
    %1037 = vmatprep.subr.bf16.mxu0 0
    %1038 = vmatpush1.bf16.msra.mxu0 0
    %1039 = vmatprep.subr.bf16.mxu0 0
    %1040 = vmatpush1.bf16.msra.mxu0 0
    %1041 = vmatprep.subr.bf16.mxu0 0
    %1042 = vmatpush1.bf16.msra.mxu0 0
    %1043 = vmatprep.subr.bf16.mxu0 0
    %1044 = vmatpush1.bf16.msra.mxu0 0
    %1045 = vmatprep.mubr.bf16.mxu0 0
    %1046 = vmatmul.mubr.bf16.gmra.mrb[0].mxu0 %v1011
    %v1047 = vpop.f32.mrb[0].mxu0
    %v1048 = vadd.f32 %v433, %v1047
    %v1049 = vpop.f32.mrb[0].mxu0
    %v1050 = vpop.f32.mrb[0].mxu0
    %v1051 = vpop.f32.mrb[0].mxu0
    %1052 = vdwg.mxu0
    %1053 = vmatprep.subr.bf16.mxu0 0
    %1054 = vmatpush1.bf16.msra.mxu0 %v351
    %1055 = vmatprep.subr.bf16.mxu0 0
    %1056 = vmatpush1.bf16.msra.mxu0 %v352
    %1057 = vmatprep.subr.bf16.mxu0 0
    %1058 = vmatpush1.bf16.msra.mxu0 0
    %1059 = vmatprep.subr.bf16.mxu0 0
    %1060 = vmatpush1.bf16.msra.mxu0 0
    %1061 = vmatprep.subr.bf16.mxu0 0
    %1062 = vmatpush1.bf16.msra.mxu0 0
    %1063 = vmatprep.subr.bf16.mxu0 0
    %1064 = vmatpush1.bf16.msra.mxu0 0
    %1065 = vmatprep.subr.bf16.mxu0 0
    %1066 = vmatpush1.bf16.msra.mxu0 0
    %1067 = vmatprep.subr.bf16.mxu0 0
    %1068 = vmatpush1.bf16.msra.mxu0 0
    %1069 = vmatprep.subr.bf16.mxu0 0
    %1070 = vmatpush1.bf16.msra.mxu0 0
    %1071 = vmatprep.subr.bf16.mxu0 0
    %1072 = vmatpush1.bf16.msra.mxu0 0
    %1073 = vmatprep.subr.bf16.mxu0 0
    %1074 = vmatpush1.bf16.msra.mxu0 0
    %1075 = vmatprep.subr.bf16.mxu0 0
    %1076 = vmatpush1.bf16.msra.mxu0 0
    %1077 = vmatprep.subr.bf16.mxu0 0
    %1078 = vmatpush1.bf16.msra.mxu0 0
    %1079 = vmatprep.subr.bf16.mxu0 0
    %1080 = vmatpush1.bf16.msra.mxu0 0
    %1081 = vmatprep.subr.bf16.mxu0 0
    %1082 = vmatpush1.bf16.msra.mxu0 0
    %1083 = vmatprep.subr.bf16.mxu0 0
    %1084 = vmatpush1.bf16.msra.mxu0 0
    %1085 = vmatprep.mubr.bf16.mxu0 0
    %1086 = vmatmul.mubr.bf16.gmra.mrb[0].mxu0 %v1011
    %v1087 = vpop.f32.mrb[0].mxu0
    %v1088 = vadd.f32 0.0, %v1087
    %v1089 = vpop.f32.mrb[0].mxu0
    %v1090 = vpop.f32.mrb[0].mxu0
    %v1091 = vpop.f32.mrb[0].mxu0
    %1092 = vdwg.mxu0
    %v1093 = vadd.f32 %v333, %v1088
    %v1094 = vxor.u32 %v1093, 2147483648
    %v1095 = vmul.f32 %v1094, 1.442695
    %v1096 = vpow.pop %v1095
    %v1097 = vadd.f32 %v1096, 1.0
    %v1098 = vrcp.pop %v1097
    %v1099 = vmul.f32 1.0, %v1098
    %v1100 = vtanh.pop %v1093
    %v1101 = vmul.f32 %v1099, %v999
    %1103 = vrot.lane.b32.xlu0 %v1100, 64
    %v1104 = vpop.permute.xlu0 %1103
    %v1106 = vmul.f32 %v1099, %v1104
    %1108 = vrot.lane.b32.xlu0 %v1106, 32
    %v1109 = vpop.permute.xlu0 %1108
    %v1111 = vadd.f32 %v1101, %v1109
    %v1112 = vtanh.pop %v1111
    %1114 = vrot.lane.b32.xlu0 %v1112, 64
    %v1115 = vpop.permute.xlu0 %1114
    %v1117 = vmul.f32 %v1099, %v1115
    %v1118 = vpack.c.bf16 %v1117, %v1117
    %1120 = vrot.lane.b32.xlu0 %v1118, 32
    %v1121 = vpop.permute.xlu0 %1120
    %v1123 = vsel %vm171, %v1121, 0
    %1125 = vmatprep.subr.bf16.mxu0 0
    %1126 = vmatpush1.bf16.msra.mxu0 %v446
    %1127 = vmatprep.subr.bf16.mxu0 0
    %1128 = vmatpush1.bf16.msra.mxu0 %v447
    %1129 = vmatprep.subr.bf16.mxu0 0
    %1130 = vmatpush1.bf16.msra.mxu0 0
    %1131 = vmatprep.subr.bf16.mxu0 0
    %1132 = vmatpush1.bf16.msra.mxu0 0
    %1133 = vmatprep.subr.bf16.mxu0 0
    %1134 = vmatpush1.bf16.msra.mxu0 0
    %1135 = vmatprep.subr.bf16.mxu0 0
    %1136 = vmatpush1.bf16.msra.mxu0 0
    %1137 = vmatprep.subr.bf16.mxu0 0
    %1138 = vmatpush1.bf16.msra.mxu0 0
    %1139 = vmatprep.subr.bf16.mxu0 0
    %1140 = vmatpush1.bf16.msra.mxu0 0
    %1141 = vmatprep.subr.bf16.mxu0 0
    %1142 = vmatpush1.bf16.msra.mxu0 0
    %1143 = vmatprep.subr.bf16.mxu0 0
    %1144 = vmatpush1.bf16.msra.mxu0 0
    %1145 = vmatprep.subr.bf16.mxu0 0
    %1146 = vmatpush1.bf16.msra.mxu0 0
    %1147 = vmatprep.subr.bf16.mxu0 0
    %1148 = vmatpush1.bf16.msra.mxu0 0
    %1149 = vmatprep.subr.bf16.mxu0 0
    %1150 = vmatpush1.bf16.msra.mxu0 0
    %1151 = vmatprep.subr.bf16.mxu0 0
    %1152 = vmatpush1.bf16.msra.mxu0 0
    %1153 = vmatprep.subr.bf16.mxu0 0
    %1154 = vmatpush1.bf16.msra.mxu0 0
    %1155 = vmatprep.subr.bf16.mxu0 0
    %1156 = vmatpush1.bf16.msra.mxu0 0
    %1157 = vmatprep.mubr.bf16.mxu0 0
    %1158 = vmatmul.mubr.bf16.gmra.mrb[0].mxu0 %v1123
    %v1159 = vpop.f32.mrb[0].mxu0
    %v1160 = vadd.f32 %v433, %v1159
    %v1161 = vpop.f32.mrb[0].mxu0
    %v1162 = vpop.f32.mrb[0].mxu0
    %v1163 = vpop.f32.mrb[0].mxu0
    %1164 = vdwg.mxu0
    %1165 = vmatprep.subr.bf16.mxu0 0
    %1166 = vmatpush1.bf16.msra.mxu0 %v351
    %1167 = vmatprep.subr.bf16.mxu0 0
    %1168 = vmatpush1.bf16.msra.mxu0 %v352
    %1169 = vmatprep.subr.bf16.mxu0 0
    %1170 = vmatpush1.bf16.msra.mxu0 0
    %1171 = vmatprep.subr.bf16.mxu0 0
    %1172 = vmatpush1.bf16.msra.mxu0 0
    %1173 = vmatprep.subr.bf16.mxu0 0
    %1174 = vmatpush1.bf16.msra.mxu0 0
    %1175 = vmatprep.subr.bf16.mxu0 0
    %1176 = vmatpush1.bf16.msra.mxu0 0
    %1177 = vmatprep.subr.bf16.mxu0 0
    %1178 = vmatpush1.bf16.msra.mxu0 0
    %1179 = vmatprep.subr.bf16.mxu0 0
    %1180 = vmatpush1.bf16.msra.mxu0 0
    %1181 = vmatprep.subr.bf16.mxu0 0
    %1182 = vmatpush1.bf16.msra.mxu0 0
    %1183 = vmatprep.subr.bf16.mxu0 0
    %1184 = vmatpush1.bf16.msra.mxu0 0
    %1185 = vmatprep.subr.bf16.mxu0 0
    %1186 = vmatpush1.bf16.msra.mxu0 0
    %1187 = vmatprep.subr.bf16.mxu0 0
    %1188 = vmatpush1.bf16.msra.mxu0 0
    %1189 = vmatprep.subr.bf16.mxu0 0
    %1190 = vmatpush1.bf16.msra.mxu0 0
    %1191 = vmatprep.subr.bf16.mxu0 0
    %1192 = vmatpush1.bf16.msra.mxu0 0
    %1193 = vmatprep.subr.bf16.mxu0 0
    %1194 = vmatpush1.bf16.msra.mxu0 0
    %1195 = vmatprep.subr.bf16.mxu0 0
    %1196 = vmatpush1.bf16.msra.mxu0 0
    %1197 = vmatprep.mubr.bf16.mxu0 0
    %1198 = vmatmul.mubr.bf16.gmra.mrb[0].mxu0 %v1123
    %v1199 = vpop.f32.mrb[0].mxu0
    %v1200 = vadd.f32 0.0, %v1199
    %v1201 = vpop.f32.mrb[0].mxu0
    %v1202 = vpop.f32.mrb[0].mxu0
    %v1203 = vpop.f32.mrb[0].mxu0
    %1204 = vdwg.mxu0
    %v1205 = vadd.f32 %v335, %v1200
    %v1206 = vxor.u32 %v1205, 2147483648
    %v1207 = vmul.f32 %v1206, 1.442695
    %v1208 = vpow.pop %v1207
    %v1209 = vadd.f32 %v1208, 1.0
    %v1210 = vrcp.pop %v1209
    %v1211 = vmul.f32 1.0, %v1210
    %v1212 = vtanh.pop %v1205
    %v1213 = vmul.f32 %v1211, %v1111
    %1215 = vrot.lane.b32.xlu0 %v1212, 64
    %v1216 = vpop.permute.xlu0 %1215
    %v1218 = vmul.f32 %v1211, %v1216
    %1220 = vrot.lane.b32.xlu0 %v1218, 32
    %v1221 = vpop.permute.xlu0 %1220
    %v1223 = vadd.f32 %v1213, %v1221
    %v1224 = vtanh.pop %v1223
    %1226 = vrot.lane.b32.xlu0 %v1224, 64
    %v1227 = vpop.permute.xlu0 %1226
    %v1229 = vmul.f32 %v1211, %v1227
    %v1230 = vpack.c.bf16 %v1229, %v1229
    %1232 = vrot.lane.b32.xlu0 %v1230, 32
    %v1233 = vpop.permute.xlu0 %1232
    %v1235 = vsel %vm171, %v1233, 0
    %1237 = vmatprep.subr.bf16.mxu0 0
    %1238 = vmatpush1.bf16.msra.mxu0 %v446
    %1239 = vmatprep.subr.bf16.mxu0 0
    %1240 = vmatpush1.bf16.msra.mxu0 %v447
    %1241 = vmatprep.subr.bf16.mxu0 0
    %1242 = vmatpush1.bf16.msra.mxu0 0
    %1243 = vmatprep.subr.bf16.mxu0 0
    %1244 = vmatpush1.bf16.msra.mxu0 0
    %1245 = vmatprep.subr.bf16.mxu0 0
    %1246 = vmatpush1.bf16.msra.mxu0 0
    %1247 = vmatprep.subr.bf16.mxu0 0
    %1248 = vmatpush1.bf16.msra.mxu0 0
    %1249 = vmatprep.subr.bf16.mxu0 0
    %1250 = vmatpush1.bf16.msra.mxu0 0
    %1251 = vmatprep.subr.bf16.mxu0 0
    %1252 = vmatpush1.bf16.msra.mxu0 0
    %1253 = vmatprep.subr.bf16.mxu0 0
    %1254 = vmatpush1.bf16.msra.mxu0 0
    %1255 = vmatprep.subr.bf16.mxu0 0
    %1256 = vmatpush1.bf16.msra.mxu0 0
    %1257 = vmatprep.subr.bf16.mxu0 0
    %1258 = vmatpush1.bf16.msra.mxu0 0
    %1259 = vmatprep.subr.bf16.mxu0 0
    %1260 = vmatpush1.bf16.msra.mxu0 0
    %1261 = vmatprep.subr.bf16.mxu0 0
    %1262 = vmatpush1.bf16.msra.mxu0 0
    %1263 = vmatprep.subr.bf16.mxu0 0
    %1264 = vmatpush1.bf16.msra.mxu0 0
    %1265 = vmatprep.subr.bf16.mxu0 0
    %1266 = vmatpush1.bf16.msra.mxu0 0
    %1267 = vmatprep.subr.bf16.mxu0 0
    %1268 = vmatpush1.bf16.msra.mxu0 0
    %1269 = vmatprep.mubr.bf16.mxu0 0
    %1270 = vmatmul.mubr.bf16.gmra.mrb[0].mxu0 %v1235
    %v1271 = vpop.f32.mrb[0].mxu0
    %v1272 = vadd.f32 %v433, %v1271
    %v1273 = vpop.f32.mrb[0].mxu0
    %v1274 = vpop.f32.mrb[0].mxu0
    %v1275 = vpop.f32.mrb[0].mxu0
    %1276 = vdwg.mxu0
    %s1277 = scalar_lea.vmem %s4, 16
    %v1278 = vld [vmem:[%s1277] sm:$0xf]
    %v1279 = vld [vmem:[%s1277 + $0x4] sm:$0xf]
    %v1280 = vld [vmem:[%s1277 + $0x8] sm:$0xf]
    %v1281 = vld [vmem:[%s1277 + $0xc] sm:$0xf]
    %v1286 = vunpack.c.l.b16 %v1278
    %v1287 = vunpack.c.l.b16 %v1279
    %v1288 = vunpack.c.l.b16 %v1280
    %v1289 = vunpack.c.l.b16 %v1281
    %v1290 = vpack.c.b16 %v1287, %v1286
    %v1291 = vpack.c.b16 %v1289, %v1288
    %1294 = vmatprep.subr.bf16.mxu0 0
    %1295 = vmatpush1.bf16.msra.mxu0 %v1290
    %1296 = vmatprep.subr.bf16.mxu0 0
    %1297 = vmatpush1.bf16.msra.mxu0 %v1291
    %1298 = vmatprep.subr.bf16.mxu0 0
    %1299 = vmatpush1.bf16.msra.mxu0 0
    %1300 = vmatprep.subr.bf16.mxu0 0
    %1301 = vmatpush1.bf16.msra.mxu0 0
    %1302 = vmatprep.subr.bf16.mxu0 0
    %1303 = vmatpush1.bf16.msra.mxu0 0
    %1304 = vmatprep.subr.bf16.mxu0 0
    %1305 = vmatpush1.bf16.msra.mxu0 0
    %1306 = vmatprep.subr.bf16.mxu0 0
    %1307 = vmatpush1.bf16.msra.mxu0 0
    %1308 = vmatprep.subr.bf16.mxu0 0
    %1309 = vmatpush1.bf16.msra.mxu0 0
    %1310 = vmatprep.subr.bf16.mxu0 0
    %1311 = vmatpush1.bf16.msra.mxu0 0
    %1312 = vmatprep.subr.bf16.mxu0 0
    %1313 = vmatpush1.bf16.msra.mxu0 0
    %1314 = vmatprep.subr.bf16.mxu0 0
    %1315 = vmatpush1.bf16.msra.mxu0 0
    %1316 = vmatprep.subr.bf16.mxu0 0
    %1317 = vmatpush1.bf16.msra.mxu0 0
    %1318 = vmatprep.subr.bf16.mxu0 0
    %1319 = vmatpush1.bf16.msra.mxu0 0
    %1320 = vmatprep.subr.bf16.mxu0 0
    %1321 = vmatpush1.bf16.msra.mxu0 0
    %1322 = vmatprep.subr.bf16.mxu0 0
    %1323 = vmatpush1.bf16.msra.mxu0 0
    %1324 = vmatprep.subr.bf16.mxu0 0
    %1325 = vmatpush1.bf16.msra.mxu0 0
    %1326 = vmatprep.mubr.bf16.mxu0 0
    %1327 = vmatmul.mubr.bf16.gmra.mrb[0].mxu0 %v356
    %v1328 = vpop.f32.mrb[0].mxu0
    %v1329 = vadd.f32 0.0, %v1328
    %v1330 = vpop.f32.mrb[0].mxu0
    %v1331 = vpop.f32.mrb[0].mxu0
    %v1332 = vpop.f32.mrb[0].mxu0
    %1333 = vdwg.mxu0
    %v1334 = vadd.f32 %v488, %v1329
    %v1335 = vxor.u32 %v1334, 2147483648
    %v1336 = vmul.f32 %v1335, 1.442695
    %v1337 = vpow.pop %v1336
    %v1338 = vadd.f32 %v1337, 1.0
    %v1339 = vrcp.pop %v1338
    %v1340 = vmul.f32 1.0, %v1339
    %v1341 = vtanh.pop %v1334
    %v1342 = vmul.f32 %v1340, 0.0
    %1344 = vrot.lane.b32.xlu0 %v1341, 64
    %v1345 = vpop.permute.xlu0 %1344
    %v1347 = vmul.f32 %v1340, %v1345
    %1349 = vrot.lane.b32.xlu0 %v1347, 32
    %v1350 = vpop.permute.xlu0 %1349
    %v1352 = vadd.f32 %v1342, %v1350
    %v1353 = vtanh.pop %v1352
    %1355 = vrot.lane.b32.xlu0 %v1353, 64
    %v1356 = vpop.permute.xlu0 %1355
    %v1358 = vmul.f32 %v1340, %v1356
    %v1359 = vpack.c.bf16 %v1358, %v1358
    %v1360 = vld [vmem:[%s6] sm:$0xf]
    %v1361 = vld [vmem:[%s6 + $0x4] sm:$0xf]
    %v1362 = vld [vmem:[%s6 + $0x8] sm:$0xf]
    %v1363 = vld [vmem:[%s6 + $0xc] sm:$0xf]
    %1365 = vrot.lane.b32.xlu0 %v1359, 32
    %v1366 = vpop.permute.xlu0 %1365
    %v1368 = vsel %vm171, %v1366, 0
    %1370 = vmatprep.subr.bf16.mxu0 0
    %1371 = vmatpush1.bf16.msra.mxu0 %v1290
    %1372 = vmatprep.subr.bf16.mxu0 0
    %1373 = vmatpush1.bf16.msra.mxu0 %v1291
    %1374 = vmatprep.subr.bf16.mxu0 0
    %1375 = vmatpush1.bf16.msra.mxu0 0
    %1376 = vmatprep.subr.bf16.mxu0 0
    %1377 = vmatpush1.bf16.msra.mxu0 0
    %1378 = vmatprep.subr.bf16.mxu0 0
    %1379 = vmatpush1.bf16.msra.mxu0 0
    %1380 = vmatprep.subr.bf16.mxu0 0
    %1381 = vmatpush1.bf16.msra.mxu0 0
    %1382 = vmatprep.subr.bf16.mxu0 0
    %1383 = vmatpush1.bf16.msra.mxu0 0
    %1384 = vmatprep.subr.bf16.mxu0 0
    %1385 = vmatpush1.bf16.msra.mxu0 0
    %1386 = vmatprep.subr.bf16.mxu0 0
    %1387 = vmatpush1.bf16.msra.mxu0 0
    %1388 = vmatprep.subr.bf16.mxu0 0
    %1389 = vmatpush1.bf16.msra.mxu0 0
    %1390 = vmatprep.subr.bf16.mxu0 0
    %1391 = vmatpush1.bf16.msra.mxu0 0
    %1392 = vmatprep.subr.bf16.mxu0 0
    %1393 = vmatpush1.bf16.msra.mxu0 0
    %1394 = vmatprep.subr.bf16.mxu0 0
    %1395 = vmatpush1.bf16.msra.mxu0 0
    %1396 = vmatprep.subr.bf16.mxu0 0
    %1397 = vmatpush1.bf16.msra.mxu0 0
    %1398 = vmatprep.subr.bf16.mxu0 0
    %1399 = vmatpush1.bf16.msra.mxu0 0
    %1400 = vmatprep.subr.bf16.mxu0 0
    %1401 = vmatpush1.bf16.msra.mxu0 0
    %1402 = vmatprep.mubr.bf16.mxu0 0
    %1403 = vmatmul.mubr.bf16.gmra.mrb[0].mxu0 %v1368
    %v1404 = vpop.f32.mrb[0].mxu0
    %v1405 = vadd.f32 0.0, %v1404
    %v1406 = vpop.f32.mrb[0].mxu0
    %v1407 = vpop.f32.mrb[0].mxu0
    %v1408 = vpop.f32.mrb[0].mxu0
    %1409 = vdwg.mxu0
    %v1410 = vadd.f32 %v600, %v1405
    %v1411 = vxor.u32 %v1410, 2147483648
    %v1412 = vmul.f32 %v1411, 1.442695
    %v1413 = vpow.pop %v1412
    %v1414 = vadd.f32 %v1413, 1.0
    %v1415 = vrcp.pop %v1414
    %v1416 = vmul.f32 1.0, %v1415
    %v1417 = vtanh.pop %v1410
    %v1418 = vmul.f32 %v1416, %v1352
    %1420 = vrot.lane.b32.xlu0 %v1417, 64
    %v1421 = vpop.permute.xlu0 %1420
    %v1423 = vmul.f32 %v1416, %v1421
    %1425 = vrot.lane.b32.xlu0 %v1423, 32
    %v1426 = vpop.permute.xlu0 %1425
    %v1428 = vadd.f32 %v1418, %v1426
    %v1429 = vtanh.pop %v1428
    %1431 = vrot.lane.b32.xlu0 %v1429, 64
    %v1432 = vpop.permute.xlu0 %1431
    %v1434 = vmul.f32 %v1416, %v1432
    %v1435 = vpack.c.bf16 %v1434, %v1434
    %s1436 = scalar_lea.vmem %s6, 16
    %v1437 = vld [vmem:[%s1436] sm:$0xf]
    %v1438 = vld [vmem:[%s1436 + $0x4] sm:$0xf]
    %v1439 = vld [vmem:[%s1436 + $0x8] sm:$0xf]
    %v1440 = vld [vmem:[%s1436 + $0xc] sm:$0xf]
    %1442 = vrot.lane.b32.xlu0 %v1435, 32
    %v1443 = vpop.permute.xlu0 %1442
    %v1448 = vunpack.c.l.b16 %v1437
    %v1449 = vunpack.c.l.b16 %v1438
    %v1450 = vunpack.c.l.b16 %v1439
    %v1451 = vunpack.c.l.b16 %v1440
    %v1452 = vpack.c.b16 %v1449, %v1448
    %v1453 = vpack.c.b16 %v1451, %v1450
    %v1457 = vsel %vm171, %v1443, 0
    %1459 = vmatprep.subr.bf16.mxu0 0
    %1460 = vmatpush1.bf16.msra.mxu0 %v1452
    %1461 = vmatprep.subr.bf16.mxu0 0
    %1462 = vmatpush1.bf16.msra.mxu0 %v1453
    %1463 = vmatprep.subr.bf16.mxu0 0
    %1464 = vmatpush1.bf16.msra.mxu0 0
    %1465 = vmatprep.subr.bf16.mxu0 0
    %1466 = vmatpush1.bf16.msra.mxu0 0
    %1467 = vmatprep.subr.bf16.mxu0 0
    %1468 = vmatpush1.bf16.msra.mxu0 0
    %1469 = vmatprep.subr.bf16.mxu0 0
    %1470 = vmatpush1.bf16.msra.mxu0 0
    %1471 = vmatprep.subr.bf16.mxu0 0
    %1472 = vmatpush1.bf16.msra.mxu0 0
    %1473 = vmatprep.subr.bf16.mxu0 0
    %1474 = vmatpush1.bf16.msra.mxu0 0
    %1475 = vmatprep.subr.bf16.mxu0 0
    %1476 = vmatpush1.bf16.msra.mxu0 0
    %1477 = vmatprep.subr.bf16.mxu0 0
    %1478 = vmatpush1.bf16.msra.mxu0 0
    %1479 = vmatprep.subr.bf16.mxu0 0
    %1480 = vmatpush1.bf16.msra.mxu0 0
    %1481 = vmatprep.subr.bf16.mxu0 0
    %1482 = vmatpush1.bf16.msra.mxu0 0
    %1483 = vmatprep.subr.bf16.mxu0 0
    %1484 = vmatpush1.bf16.msra.mxu0 0
    %1485 = vmatprep.subr.bf16.mxu0 0
    %1486 = vmatpush1.bf16.msra.mxu0 0
    %1487 = vmatprep.subr.bf16.mxu0 0
    %1488 = vmatpush1.bf16.msra.mxu0 0
    %1489 = vmatprep.subr.bf16.mxu0 0
    %1490 = vmatpush1.bf16.msra.mxu0 0
    %1491 = vmatprep.mubr.bf16.mxu0 0
    %1492 = vmatmul.mubr.bf16.gmra.mrb[0].mxu0 %v1457
    %v1493 = vpop.f32.mrb[0].mxu0
    %v1494 = vadd.f32 0.0, %v1493
    %v1495 = vpop.f32.mrb[0].mxu0
    %v1496 = vpop.f32.mrb[0].mxu0
    %v1497 = vpop.f32.mrb[0].mxu0
    %1498 = vdwg.mxu0
    %v1503 = vunpack.c.l.b16 %v1360
    %v1504 = vunpack.c.l.b16 %v1361
    %v1505 = vunpack.c.l.b16 %v1362
    %v1506 = vunpack.c.l.b16 %v1363
    %v1507 = vpack.c.b16 %v1504, %v1503
    %v1508 = vpack.c.b16 %v1506, %v1505
    %1511 = vmatprep.subr.bf16.mxu0 0
    %1512 = vmatpush1.bf16.msra.mxu0 %v1507
    %1513 = vmatprep.subr.bf16.mxu0 0
    %1514 = vmatpush1.bf16.msra.mxu0 %v1508
    %1515 = vmatprep.subr.bf16.mxu0 0
    %1516 = vmatpush1.bf16.msra.mxu0 0
    %1517 = vmatprep.subr.bf16.mxu0 0
    %1518 = vmatpush1.bf16.msra.mxu0 0
    %1519 = vmatprep.subr.bf16.mxu0 0
    %1520 = vmatpush1.bf16.msra.mxu0 0
    %1521 = vmatprep.subr.bf16.mxu0 0
    %1522 = vmatpush1.bf16.msra.mxu0 0
    %1523 = vmatprep.subr.bf16.mxu0 0
    %1524 = vmatpush1.bf16.msra.mxu0 0
    %1525 = vmatprep.subr.bf16.mxu0 0
    %1526 = vmatpush1.bf16.msra.mxu0 0
    %1527 = vmatprep.subr.bf16.mxu0 0
    %1528 = vmatpush1.bf16.msra.mxu0 0
    %1529 = vmatprep.subr.bf16.mxu0 0
    %1530 = vmatpush1.bf16.msra.mxu0 0
    %1531 = vmatprep.subr.bf16.mxu0 0
    %1532 = vmatpush1.bf16.msra.mxu0 0
    %1533 = vmatprep.subr.bf16.mxu0 0
    %1534 = vmatpush1.bf16.msra.mxu0 0
    %1535 = vmatprep.subr.bf16.mxu0 0
    %1536 = vmatpush1.bf16.msra.mxu0 0
    %1537 = vmatprep.subr.bf16.mxu0 0
    %1538 = vmatpush1.bf16.msra.mxu0 0
    %1539 = vmatprep.subr.bf16.mxu0 0
    %1540 = vmatpush1.bf16.msra.mxu0 0
    %1541 = vmatprep.subr.bf16.mxu0 0
    %1542 = vmatpush1.bf16.msra.mxu0 0
    %1543 = vmatprep.mubr.bf16.mxu0 0
    %1544 = vmatmul.mubr.bf16.gmra.mrb[0].mxu0 %v1368
    %v1545 = vpop.f32.mrb[0].mxu0
    %v1546 = vadd.f32 %v1494, %v1545
    %v1547 = vpop.f32.mrb[0].mxu0
    %v1548 = vpop.f32.mrb[0].mxu0
    %v1549 = vpop.f32.mrb[0].mxu0
    %1550 = vdwg.mxu0
    %1551 = vmatprep.subr.bf16.mxu0 0
    %1552 = vmatpush1.bf16.msra.mxu0 %v1290
    %1553 = vmatprep.subr.bf16.mxu0 0
    %1554 = vmatpush1.bf16.msra.mxu0 %v1291
    %1555 = vmatprep.subr.bf16.mxu0 0
    %1556 = vmatpush1.bf16.msra.mxu0 0
    %1557 = vmatprep.subr.bf16.mxu0 0
    %1558 = vmatpush1.bf16.msra.mxu0 0
    %1559 = vmatprep.subr.bf16.mxu0 0
    %1560 = vmatpush1.bf16.msra.mxu0 0
    %1561 = vmatprep.subr.bf16.mxu0 0
    %1562 = vmatpush1.bf16.msra.mxu0 0
    %1563 = vmatprep.subr.bf16.mxu0 0
    %1564 = vmatpush1.bf16.msra.mxu0 0
    %1565 = vmatprep.subr.bf16.mxu0 0
    %1566 = vmatpush1.bf16.msra.mxu0 0
    %1567 = vmatprep.subr.bf16.mxu0 0
    %1568 = vmatpush1.bf16.msra.mxu0 0
    %1569 = vmatprep.subr.bf16.mxu0 0
    %1570 = vmatpush1.bf16.msra.mxu0 0
    %1571 = vmatprep.subr.bf16.mxu0 0
    %1572 = vmatpush1.bf16.msra.mxu0 0
    %1573 = vmatprep.subr.bf16.mxu0 0
    %1574 = vmatpush1.bf16.msra.mxu0 0
    %1575 = vmatprep.subr.bf16.mxu0 0
    %1576 = vmatpush1.bf16.msra.mxu0 0
    %1577 = vmatprep.subr.bf16.mxu0 0
    %1578 = vmatpush1.bf16.msra.mxu0 0
    %1579 = vmatprep.subr.bf16.mxu0 0
    %1580 = vmatpush1.bf16.msra.mxu0 0
    %1581 = vmatprep.subr.bf16.mxu0 0
    %1582 = vmatpush1.bf16.msra.mxu0 0
    %1583 = vmatprep.mubr.bf16.mxu0 0
    %1584 = vmatmul.mubr.bf16.gmra.mrb[0].mxu0 %v1457
    %v1585 = vpop.f32.mrb[0].mxu0
    %v1586 = vadd.f32 0.0, %v1585
    %v1587 = vpop.f32.mrb[0].mxu0
    %v1588 = vpop.f32.mrb[0].mxu0
    %v1589 = vpop.f32.mrb[0].mxu0
    %1590 = vdwg.mxu0
    %v1591 = vadd.f32 %v712, %v1586
    %v1592 = vxor.u32 %v1591, 2147483648
    %v1593 = vmul.f32 %v1592, 1.442695
    %v1594 = vpow.pop %v1593
    %v1595 = vadd.f32 %v1594, 1.0
    %v1596 = vrcp.pop %v1595
    %v1597 = vmul.f32 1.0, %v1596
    %v1598 = vtanh.pop %v1591
    %v1599 = vmul.f32 %v1597, %v1428
    %1601 = vrot.lane.b32.xlu0 %v1598, 64
    %v1602 = vpop.permute.xlu0 %1601
    %v1604 = vmul.f32 %v1597, %v1602
    %1606 = vrot.lane.b32.xlu0 %v1604, 32
    %v1607 = vpop.permute.xlu0 %1606
    %v1609 = vadd.f32 %v1599, %v1607
    %v1610 = vtanh.pop %v1609
    %1612 = vrot.lane.b32.xlu0 %v1610, 64
    %v1613 = vpop.permute.xlu0 %1612
    %v1615 = vmul.f32 %v1597, %v1613
    %v1616 = vpack.c.bf16 %v1615, %v1615
    %s1617 = scalar_lea.vmem %s6, 32
    %v1618 = vld [vmem:[%s1617] sm:$0xf]
    %v1619 = vld [vmem:[%s1617 + $0x4] sm:$0xf]
    %v1620 = vld [vmem:[%s1617 + $0x8] sm:$0xf]
    %v1621 = vld [vmem:[%s1617 + $0xc] sm:$0xf]
    %1623 = vrot.lane.b32.xlu0 %v1616, 32
    %v1624 = vpop.permute.xlu0 %1623
    %v1629 = vunpack.c.l.b16 %v1618
    %v1630 = vunpack.c.l.b16 %v1619
    %v1631 = vunpack.c.l.b16 %v1620
    %v1632 = vunpack.c.l.b16 %v1621
    %v1633 = vpack.c.b16 %v1630, %v1629
    %v1634 = vpack.c.b16 %v1632, %v1631
    %v1638 = vsel %vm171, %v1624, 0
    %1640 = vmatprep.subr.bf16.mxu0 0
    %1641 = vmatpush1.bf16.msra.mxu0 %v1633
    %1642 = vmatprep.subr.bf16.mxu0 0
    %1643 = vmatpush1.bf16.msra.mxu0 %v1634
    %1644 = vmatprep.subr.bf16.mxu0 0
    %1645 = vmatpush1.bf16.msra.mxu0 0
    %1646 = vmatprep.subr.bf16.mxu0 0
    %1647 = vmatpush1.bf16.msra.mxu0 0
    %1648 = vmatprep.subr.bf16.mxu0 0
    %1649 = vmatpush1.bf16.msra.mxu0 0
    %1650 = vmatprep.subr.bf16.mxu0 0
    %1651 = vmatpush1.bf16.msra.mxu0 0
    %1652 = vmatprep.subr.bf16.mxu0 0
    %1653 = vmatpush1.bf16.msra.mxu0 0
    %1654 = vmatprep.subr.bf16.mxu0 0
    %1655 = vmatpush1.bf16.msra.mxu0 0
    %1656 = vmatprep.subr.bf16.mxu0 0
    %1657 = vmatpush1.bf16.msra.mxu0 0
    %1658 = vmatprep.subr.bf16.mxu0 0
    %1659 = vmatpush1.bf16.msra.mxu0 0
    %1660 = vmatprep.subr.bf16.mxu0 0
    %1661 = vmatpush1.bf16.msra.mxu0 0
    %1662 = vmatprep.subr.bf16.mxu0 0
    %1663 = vmatpush1.bf16.msra.mxu0 0
    %1664 = vmatprep.subr.bf16.mxu0 0
    %1665 = vmatpush1.bf16.msra.mxu0 0
    %1666 = vmatprep.subr.bf16.mxu0 0
    %1667 = vmatpush1.bf16.msra.mxu0 0
    %1668 = vmatprep.subr.bf16.mxu0 0
    %1669 = vmatpush1.bf16.msra.mxu0 0
    %1670 = vmatprep.subr.bf16.mxu0 0
    %1671 = vmatpush1.bf16.msra.mxu0 0
    %1672 = vmatprep.mubr.bf16.mxu0 0
    %1673 = vmatmul.mubr.bf16.gmra.mrb[0].mxu0 %v1638
    %v1674 = vpop.f32.mrb[0].mxu0
    %v1675 = vadd.f32 0.0, %v1674
    %v1676 = vpop.f32.mrb[0].mxu0
    %v1677 = vpop.f32.mrb[0].mxu0
    %v1678 = vpop.f32.mrb[0].mxu0
    %1679 = vdwg.mxu0
    %v1680 = vadd.f32 %v1546, %v1675
    %1681 = vmatprep.subr.bf16.mxu0 0
    %1682 = vmatpush1.bf16.msra.mxu0 %v1290
    %1683 = vmatprep.subr.bf16.mxu0 0
    %1684 = vmatpush1.bf16.msra.mxu0 %v1291
    %1685 = vmatprep.subr.bf16.mxu0 0
    %1686 = vmatpush1.bf16.msra.mxu0 0
    %1687 = vmatprep.subr.bf16.mxu0 0
    %1688 = vmatpush1.bf16.msra.mxu0 0
    %1689 = vmatprep.subr.bf16.mxu0 0
    %1690 = vmatpush1.bf16.msra.mxu0 0
    %1691 = vmatprep.subr.bf16.mxu0 0
    %1692 = vmatpush1.bf16.msra.mxu0 0
    %1693 = vmatprep.subr.bf16.mxu0 0
    %1694 = vmatpush1.bf16.msra.mxu0 0
    %1695 = vmatprep.subr.bf16.mxu0 0
    %1696 = vmatpush1.bf16.msra.mxu0 0
    %1697 = vmatprep.subr.bf16.mxu0 0
    %1698 = vmatpush1.bf16.msra.mxu0 0
    %1699 = vmatprep.subr.bf16.mxu0 0
    %1700 = vmatpush1.bf16.msra.mxu0 0
    %1701 = vmatprep.subr.bf16.mxu0 0
    %1702 = vmatpush1.bf16.msra.mxu0 0
    %1703 = vmatprep.subr.bf16.mxu0 0
    %1704 = vmatpush1.bf16.msra.mxu0 0
    %1705 = vmatprep.subr.bf16.mxu0 0
    %1706 = vmatpush1.bf16.msra.mxu0 0
    %1707 = vmatprep.subr.bf16.mxu0 0
    %1708 = vmatpush1.bf16.msra.mxu0 0
    %1709 = vmatprep.subr.bf16.mxu0 0
    %1710 = vmatpush1.bf16.msra.mxu0 0
    %1711 = vmatprep.subr.bf16.mxu0 0
    %1712 = vmatpush1.bf16.msra.mxu0 0
    %1713 = vmatprep.mubr.bf16.mxu0 0
    %1714 = vmatmul.mubr.bf16.gmra.mrb[0].mxu0 %v1638
    %v1715 = vpop.f32.mrb[0].mxu0
    %v1716 = vadd.f32 0.0, %v1715
    %v1717 = vpop.f32.mrb[0].mxu0
    %v1718 = vpop.f32.mrb[0].mxu0
    %v1719 = vpop.f32.mrb[0].mxu0
    %1720 = vdwg.mxu0
    %v1721 = vadd.f32 %v824, %v1716
    %v1722 = vxor.u32 %v1721, 2147483648
    %v1723 = vmul.f32 %v1722, 1.442695
    %v1724 = vpow.pop %v1723
    %v1725 = vadd.f32 %v1724, 1.0
    %v1726 = vrcp.pop %v1725
    %v1727 = vmul.f32 1.0, %v1726
    %v1728 = vtanh.pop %v1721
    %v1729 = vmul.f32 %v1727, %v1609
    %1731 = vrot.lane.b32.xlu0 %v1728, 64
    %v1732 = vpop.permute.xlu0 %1731
    %v1734 = vmul.f32 %v1727, %v1732
    %1736 = vrot.lane.b32.xlu0 %v1734, 32
    %v1737 = vpop.permute.xlu0 %1736
    %v1739 = vadd.f32 %v1729, %v1737
    %v1740 = vtanh.pop %v1739
    %1742 = vrot.lane.b32.xlu0 %v1740, 64
    %v1743 = vpop.permute.xlu0 %1742
    %v1745 = vmul.f32 %v1727, %v1743
    %v1746 = vpack.c.bf16 %v1745, %v1745
    %s1747 = scalar_lea.vmem %s6, 48
    %v1748 = vld [vmem:[%s1747] sm:$0xf]
    %v1749 = vld [vmem:[%s1747 + $0x4] sm:$0xf]
    %v1750 = vld [vmem:[%s1747 + $0x8] sm:$0xf]
    %v1751 = vld [vmem:[%s1747 + $0xc] sm:$0xf]
    %1753 = vrot.lane.b32.xlu0 %v1746, 32
    %v1754 = vpop.permute.xlu0 %1753
    %v1759 = vunpack.c.l.b16 %v1748
    %v1760 = vunpack.c.l.b16 %v1749
    %v1761 = vunpack.c.l.b16 %v1750
    %v1762 = vunpack.c.l.b16 %v1751
    %v1763 = vpack.c.b16 %v1760, %v1759
    %v1764 = vpack.c.b16 %v1762, %v1761
    %v1768 = vsel %vm171, %v1754, 0
    %1770 = vmatprep.subr.bf16.mxu0 0
    %1771 = vmatpush1.bf16.msra.mxu0 %v1763
    %1772 = vmatprep.subr.bf16.mxu0 0
    %1773 = vmatpush1.bf16.msra.mxu0 %v1764
    %1774 = vmatprep.subr.bf16.mxu0 0
    %1775 = vmatpush1.bf16.msra.mxu0 0
    %1776 = vmatprep.subr.bf16.mxu0 0
    %1777 = vmatpush1.bf16.msra.mxu0 0
    %1778 = vmatprep.subr.bf16.mxu0 0
    %1779 = vmatpush1.bf16.msra.mxu0 0
    %1780 = vmatprep.subr.bf16.mxu0 0
    %1781 = vmatpush1.bf16.msra.mxu0 0
    %1782 = vmatprep.subr.bf16.mxu0 0
    %1783 = vmatpush1.bf16.msra.mxu0 0
    %1784 = vmatprep.subr.bf16.mxu0 0
    %1785 = vmatpush1.bf16.msra.mxu0 0
    %1786 = vmatprep.subr.bf16.mxu0 0
    %1787 = vmatpush1.bf16.msra.mxu0 0
    %1788 = vmatprep.subr.bf16.mxu0 0
    %1789 = vmatpush1.bf16.msra.mxu0 0
    %1790 = vmatprep.subr.bf16.mxu0 0
    %1791 = vmatpush1.bf16.msra.mxu0 0
    %1792 = vmatprep.subr.bf16.mxu0 0
    %1793 = vmatpush1.bf16.msra.mxu0 0
    %1794 = vmatprep.subr.bf16.mxu0 0
    %1795 = vmatpush1.bf16.msra.mxu0 0
    %1796 = vmatprep.subr.bf16.mxu0 0
    %1797 = vmatpush1.bf16.msra.mxu0 0
    %1798 = vmatprep.subr.bf16.mxu0 0
    %1799 = vmatpush1.bf16.msra.mxu0 0
    %1800 = vmatprep.subr.bf16.mxu0 0
    %1801 = vmatpush1.bf16.msra.mxu0 0
    %1802 = vmatprep.mubr.bf16.mxu0 0
    %1803 = vmatmul.mubr.bf16.gmra.mrb[0].mxu0 %v1768
    %v1804 = vpop.f32.mrb[0].mxu0
    %v1805 = vadd.f32 0.0, %v1804
    %v1806 = vpop.f32.mrb[0].mxu0
    %v1807 = vpop.f32.mrb[0].mxu0
    %v1808 = vpop.f32.mrb[0].mxu0
    %1809 = vdwg.mxu0
    %v1810 = vadd.f32 %v1680, %v1805
    %1811 = vmatprep.subr.bf16.mxu0 0
    %1812 = vmatpush1.bf16.msra.mxu0 %v1290
    %1813 = vmatprep.subr.bf16.mxu0 0
    %1814 = vmatpush1.bf16.msra.mxu0 %v1291
    %1815 = vmatprep.subr.bf16.mxu0 0
    %1816 = vmatpush1.bf16.msra.mxu0 0
    %1817 = vmatprep.subr.bf16.mxu0 0
    %1818 = vmatpush1.bf16.msra.mxu0 0
    %1819 = vmatprep.subr.bf16.mxu0 0
    %1820 = vmatpush1.bf16.msra.mxu0 0
    %1821 = vmatprep.subr.bf16.mxu0 0
    %1822 = vmatpush1.bf16.msra.mxu0 0
    %1823 = vmatprep.subr.bf16.mxu0 0
    %1824 = vmatpush1.bf16.msra.mxu0 0
    %1825 = vmatprep.subr.bf16.mxu0 0
    %1826 = vmatpush1.bf16.msra.mxu0 0
    %1827 = vmatprep.subr.bf16.mxu0 0
    %1828 = vmatpush1.bf16.msra.mxu0 0
    %1829 = vmatprep.subr.bf16.mxu0 0
    %1830 = vmatpush1.bf16.msra.mxu0 0
    %1831 = vmatprep.subr.bf16.mxu0 0
    %1832 = vmatpush1.bf16.msra.mxu0 0
    %1833 = vmatprep.subr.bf16.mxu0 0
    %1834 = vmatpush1.bf16.msra.mxu0 0
    %1835 = vmatprep.subr.bf16.mxu0 0
    %1836 = vmatpush1.bf16.msra.mxu0 0
    %1837 = vmatprep.subr.bf16.mxu0 0
    %1838 = vmatpush1.bf16.msra.mxu0 0
    %1839 = vmatprep.subr.bf16.mxu0 0
    %1840 = vmatpush1.bf16.msra.mxu0 0
    %1841 = vmatprep.subr.bf16.mxu0 0
    %1842 = vmatpush1.bf16.msra.mxu0 0
    %1843 = vmatprep.mubr.bf16.mxu0 0
    %1844 = vmatmul.mubr.bf16.gmra.mrb[0].mxu0 %v1768
    %v1845 = vpop.f32.mrb[0].mxu0
    %v1846 = vadd.f32 0.0, %v1845
    %v1847 = vpop.f32.mrb[0].mxu0
    %v1848 = vpop.f32.mrb[0].mxu0
    %v1849 = vpop.f32.mrb[0].mxu0
    %1850 = vdwg.mxu0
    %v1851 = vadd.f32 %v936, %v1846
    %v1852 = vxor.u32 %v1851, 2147483648
    %v1853 = vmul.f32 %v1852, 1.442695
    %v1854 = vpow.pop %v1853
    %v1855 = vadd.f32 %v1854, 1.0
    %v1856 = vrcp.pop %v1855
    %v1857 = vmul.f32 1.0, %v1856
    %v1858 = vtanh.pop %v1851
    %v1859 = vmul.f32 %v1857, %v1739
    %1861 = vrot.lane.b32.xlu0 %v1858, 64
    %v1862 = vpop.permute.xlu0 %1861
    %v1864 = vmul.f32 %v1857, %v1862
    %1866 = vrot.lane.b32.xlu0 %v1864, 32
    %v1867 = vpop.permute.xlu0 %1866
    %v1869 = vadd.f32 %v1859, %v1867
    %v1870 = vtanh.pop %v1869
    %1872 = vrot.lane.b32.xlu0 %v1870, 64
    %v1873 = vpop.permute.xlu0 %1872
    %v1875 = vmul.f32 %v1857, %v1873
    %v1876 = vpack.c.bf16 %v1875, %v1875
    %s1877 = scalar_lea.vmem %s6, 64
    %v1878 = vld [vmem:[%s1877] sm:$0xf]
    %v1879 = vld [vmem:[%s1877 + $0x4] sm:$0xf]
    %v1880 = vld [vmem:[%s1877 + $0x8] sm:$0xf]
    %v1881 = vld [vmem:[%s1877 + $0xc] sm:$0xf]
    %1883 = vrot.lane.b32.xlu0 %v1876, 32
    %v1884 = vpop.permute.xlu0 %1883
    %v1889 = vunpack.c.l.b16 %v1878
    %v1890 = vunpack.c.l.b16 %v1879
    %v1891 = vunpack.c.l.b16 %v1880
    %v1892 = vunpack.c.l.b16 %v1881
    %v1893 = vpack.c.b16 %v1890, %v1889
    %v1894 = vpack.c.b16 %v1892, %v1891
    %v1898 = vsel %vm171, %v1884, 0
    %1900 = vmatprep.subr.bf16.mxu0 0
    %1901 = vmatpush1.bf16.msra.mxu0 %v1893
    %1902 = vmatprep.subr.bf16.mxu0 0
    %1903 = vmatpush1.bf16.msra.mxu0 %v1894
    %1904 = vmatprep.subr.bf16.mxu0 0
    %1905 = vmatpush1.bf16.msra.mxu0 0
    %1906 = vmatprep.subr.bf16.mxu0 0
    %1907 = vmatpush1.bf16.msra.mxu0 0
    %1908 = vmatprep.subr.bf16.mxu0 0
    %1909 = vmatpush1.bf16.msra.mxu0 0
    %1910 = vmatprep.subr.bf16.mxu0 0
    %1911 = vmatpush1.bf16.msra.mxu0 0
    %1912 = vmatprep.subr.bf16.mxu0 0
    %1913 = vmatpush1.bf16.msra.mxu0 0
    %1914 = vmatprep.subr.bf16.mxu0 0
    %1915 = vmatpush1.bf16.msra.mxu0 0
    %1916 = vmatprep.subr.bf16.mxu0 0
    %1917 = vmatpush1.bf16.msra.mxu0 0
    %1918 = vmatprep.subr.bf16.mxu0 0
    %1919 = vmatpush1.bf16.msra.mxu0 0
    %1920 = vmatprep.subr.bf16.mxu0 0
    %1921 = vmatpush1.bf16.msra.mxu0 0
    %1922 = vmatprep.subr.bf16.mxu0 0
    %1923 = vmatpush1.bf16.msra.mxu0 0
    %1924 = vmatprep.subr.bf16.mxu0 0
    %1925 = vmatpush1.bf16.msra.mxu0 0
    %1926 = vmatprep.subr.bf16.mxu0 0
    %1927 = vmatpush1.bf16.msra.mxu0 0
    %1928 = vmatprep.subr.bf16.mxu0 0
    %1929 = vmatpush1.bf16.msra.mxu0 0
    %1930 = vmatprep.subr.bf16.mxu0 0
    %1931 = vmatpush1.bf16.msra.mxu0 0
    %1932 = vmatprep.mubr.bf16.mxu0 0
    %1933 = vmatmul.mubr.bf16.gmra.mrb[0].mxu0 %v1898
    %v1934 = vpop.f32.mrb[0].mxu0
    %v1935 = vadd.f32 0.0, %v1934
    %v1936 = vpop.f32.mrb[0].mxu0
    %v1937 = vpop.f32.mrb[0].mxu0
    %v1938 = vpop.f32.mrb[0].mxu0
    %1939 = vdwg.mxu0
    %v1940 = vadd.f32 %v1810, %v1935
    %1941 = vmatprep.subr.bf16.mxu0 0
    %1942 = vmatpush1.bf16.msra.mxu0 %v1290
    %1943 = vmatprep.subr.bf16.mxu0 0
    %1944 = vmatpush1.bf16.msra.mxu0 %v1291
    %1945 = vmatprep.subr.bf16.mxu0 0
    %1946 = vmatpush1.bf16.msra.mxu0 0
    %1947 = vmatprep.subr.bf16.mxu0 0
    %1948 = vmatpush1.bf16.msra.mxu0 0
    %1949 = vmatprep.subr.bf16.mxu0 0
    %1950 = vmatpush1.bf16.msra.mxu0 0
    %1951 = vmatprep.subr.bf16.mxu0 0
    %1952 = vmatpush1.bf16.msra.mxu0 0
    %1953 = vmatprep.subr.bf16.mxu0 0
    %1954 = vmatpush1.bf16.msra.mxu0 0
    %1955 = vmatprep.subr.bf16.mxu0 0
    %1956 = vmatpush1.bf16.msra.mxu0 0
    %1957 = vmatprep.subr.bf16.mxu0 0
    %1958 = vmatpush1.bf16.msra.mxu0 0
    %1959 = vmatprep.subr.bf16.mxu0 0
    %1960 = vmatpush1.bf16.msra.mxu0 0
    %1961 = vmatprep.subr.bf16.mxu0 0
    %1962 = vmatpush1.bf16.msra.mxu0 0
    %1963 = vmatprep.subr.bf16.mxu0 0
    %1964 = vmatpush1.bf16.msra.mxu0 0
    %1965 = vmatprep.subr.bf16.mxu0 0
    %1966 = vmatpush1.bf16.msra.mxu0 0
    %1967 = vmatprep.subr.bf16.mxu0 0
    %1968 = vmatpush1.bf16.msra.mxu0 0
    %1969 = vmatprep.subr.bf16.mxu0 0
    %1970 = vmatpush1.bf16.msra.mxu0 0
    %1971 = vmatprep.subr.bf16.mxu0 0
    %1972 = vmatpush1.bf16.msra.mxu0 0
    %1973 = vmatprep.mubr.bf16.mxu0 0
    %1974 = vmatmul.mubr.bf16.gmra.mrb[0].mxu0 %v1898
    %v1975 = vpop.f32.mrb[0].mxu0
    %v1976 = vadd.f32 0.0, %v1975
    %v1977 = vpop.f32.mrb[0].mxu0
    %v1978 = vpop.f32.mrb[0].mxu0
    %v1979 = vpop.f32.mrb[0].mxu0
    %1980 = vdwg.mxu0
    %v1981 = vadd.f32 %v1048, %v1976
    %v1982 = vxor.u32 %v1981, 2147483648
    %v1983 = vmul.f32 %v1982, 1.442695
    %v1984 = vpow.pop %v1983
    %v1985 = vadd.f32 %v1984, 1.0
    %v1986 = vrcp.pop %v1985
    %v1987 = vmul.f32 1.0, %v1986
    %v1988 = vtanh.pop %v1981
    %v1989 = vmul.f32 %v1987, %v1869
    %1991 = vrot.lane.b32.xlu0 %v1988, 64
    %v1992 = vpop.permute.xlu0 %1991
    %v1994 = vmul.f32 %v1987, %v1992
    %1996 = vrot.lane.b32.xlu0 %v1994, 32
    %v1997 = vpop.permute.xlu0 %1996
    %v1999 = vadd.f32 %v1989, %v1997
    %v2000 = vtanh.pop %v1999
    %2002 = vrot.lane.b32.xlu0 %v2000, 64
    %v2003 = vpop.permute.xlu0 %2002
    %v2005 = vmul.f32 %v1987, %v2003
    %v2006 = vpack.c.bf16 %v2005, %v2005
    %s2007 = scalar_lea.vmem %s6, 80
    %v2008 = vld [vmem:[%s2007] sm:$0xf]
    %v2009 = vld [vmem:[%s2007 + $0x4] sm:$0xf]
    %v2010 = vld [vmem:[%s2007 + $0x8] sm:$0xf]
    %v2011 = vld [vmem:[%s2007 + $0xc] sm:$0xf]
    %2013 = vrot.lane.b32.xlu0 %v2006, 32
    %v2014 = vpop.permute.xlu0 %2013
    %v2019 = vunpack.c.l.b16 %v2008
    %v2020 = vunpack.c.l.b16 %v2009
    %v2021 = vunpack.c.l.b16 %v2010
    %v2022 = vunpack.c.l.b16 %v2011
    %v2023 = vpack.c.b16 %v2020, %v2019
    %v2024 = vpack.c.b16 %v2022, %v2021
    %v2028 = vsel %vm171, %v2014, 0
    %2030 = vmatprep.subr.bf16.mxu0 0
    %2031 = vmatpush1.bf16.msra.mxu0 %v2023
    %2032 = vmatprep.subr.bf16.mxu0 0
    %2033 = vmatpush1.bf16.msra.mxu0 %v2024
    %2034 = vmatprep.subr.bf16.mxu0 0
    %2035 = vmatpush1.bf16.msra.mxu0 0
    %2036 = vmatprep.subr.bf16.mxu0 0
    %2037 = vmatpush1.bf16.msra.mxu0 0
    %2038 = vmatprep.subr.bf16.mxu0 0
    %2039 = vmatpush1.bf16.msra.mxu0 0
    %2040 = vmatprep.subr.bf16.mxu0 0
    %2041 = vmatpush1.bf16.msra.mxu0 0
    %2042 = vmatprep.subr.bf16.mxu0 0
    %2043 = vmatpush1.bf16.msra.mxu0 0
    %2044 = vmatprep.subr.bf16.mxu0 0
    %2045 = vmatpush1.bf16.msra.mxu0 0
    %2046 = vmatprep.subr.bf16.mxu0 0
    %2047 = vmatpush1.bf16.msra.mxu0 0
    %2048 = vmatprep.subr.bf16.mxu0 0
    %2049 = vmatpush1.bf16.msra.mxu0 0
    %2050 = vmatprep.subr.bf16.mxu0 0
    %2051 = vmatpush1.bf16.msra.mxu0 0
    %2052 = vmatprep.subr.bf16.mxu0 0
    %2053 = vmatpush1.bf16.msra.mxu0 0
    %2054 = vmatprep.subr.bf16.mxu0 0
    %2055 = vmatpush1.bf16.msra.mxu0 0
    %2056 = vmatprep.subr.bf16.mxu0 0
    %2057 = vmatpush1.bf16.msra.mxu0 0
    %2058 = vmatprep.subr.bf16.mxu0 0
    %2059 = vmatpush1.bf16.msra.mxu0 0
    %2060 = vmatprep.subr.bf16.mxu0 0
    %2061 = vmatpush1.bf16.msra.mxu0 0
    %2062 = vmatprep.mubr.bf16.mxu0 0
    %2063 = vmatmul.mubr.bf16.gmra.mrb[0].mxu0 %v2028
    %v2064 = vpop.f32.mrb[0].mxu0
    %v2065 = vadd.f32 0.0, %v2064
    %v2066 = vpop.f32.mrb[0].mxu0
    %v2067 = vpop.f32.mrb[0].mxu0
    %v2068 = vpop.f32.mrb[0].mxu0
    %2069 = vdwg.mxu0
    %v2070 = vadd.f32 %v1940, %v2065
    %2071 = vmatprep.subr.bf16.mxu0 0
    %2072 = vmatpush1.bf16.msra.mxu0 %v1290
    %2073 = vmatprep.subr.bf16.mxu0 0
    %2074 = vmatpush1.bf16.msra.mxu0 %v1291
    %2075 = vmatprep.subr.bf16.mxu0 0
    %2076 = vmatpush1.bf16.msra.mxu0 0
    %2077 = vmatprep.subr.bf16.mxu0 0
    %2078 = vmatpush1.bf16.msra.mxu0 0
    %2079 = vmatprep.subr.bf16.mxu0 0
    %2080 = vmatpush1.bf16.msra.mxu0 0
    %2081 = vmatprep.subr.bf16.mxu0 0
    %2082 = vmatpush1.bf16.msra.mxu0 0
    %2083 = vmatprep.subr.bf16.mxu0 0
    %2084 = vmatpush1.bf16.msra.mxu0 0
    %2085 = vmatprep.subr.bf16.mxu0 0
    %2086 = vmatpush1.bf16.msra.mxu0 0
    %2087 = vmatprep.subr.bf16.mxu0 0
    %2088 = vmatpush1.bf16.msra.mxu0 0
    %2089 = vmatprep.subr.bf16.mxu0 0
    %2090 = vmatpush1.bf16.msra.mxu0 0
    %2091 = vmatprep.subr.bf16.mxu0 0
    %2092 = vmatpush1.bf16.msra.mxu0 0
    %2093 = vmatprep.subr.bf16.mxu0 0
    %2094 = vmatpush1.bf16.msra.mxu0 0
    %2095 = vmatprep.subr.bf16.mxu0 0
    %2096 = vmatpush1.bf16.msra.mxu0 0
    %2097 = vmatprep.subr.bf16.mxu0 0
    %2098 = vmatpush1.bf16.msra.mxu0 0
    %2099 = vmatprep.subr.bf16.mxu0 0
    %2100 = vmatpush1.bf16.msra.mxu0 0
    %2101 = vmatprep.subr.bf16.mxu0 0
    %2102 = vmatpush1.bf16.msra.mxu0 0
    %2103 = vmatprep.mubr.bf16.mxu0 0
    %2104 = vmatmul.mubr.bf16.gmra.mrb[0].mxu0 %v2028
    %v2105 = vpop.f32.mrb[0].mxu0
    %v2106 = vadd.f32 0.0, %v2105
    %v2107 = vpop.f32.mrb[0].mxu0
    %v2108 = vpop.f32.mrb[0].mxu0
    %v2109 = vpop.f32.mrb[0].mxu0
    %2110 = vdwg.mxu0
    %v2111 = vadd.f32 %v1160, %v2106
    %v2112 = vxor.u32 %v2111, 2147483648
    %v2113 = vmul.f32 %v2112, 1.442695
    %v2114 = vpow.pop %v2113
    %v2115 = vadd.f32 %v2114, 1.0
    %v2116 = vrcp.pop %v2115
    %v2117 = vmul.f32 1.0, %v2116
    %v2118 = vtanh.pop %v2111
    %v2119 = vmul.f32 %v2117, %v1999
    %2121 = vrot.lane.b32.xlu0 %v2118, 64
    %v2122 = vpop.permute.xlu0 %2121
    %v2124 = vmul.f32 %v2117, %v2122
    %2126 = vrot.lane.b32.xlu0 %v2124, 32
    %v2127 = vpop.permute.xlu0 %2126
    %v2129 = vadd.f32 %v2119, %v2127
    %v2130 = vtanh.pop %v2129
    %2132 = vrot.lane.b32.xlu0 %v2130, 64
    %v2133 = vpop.permute.xlu0 %2132
    %v2135 = vmul.f32 %v2117, %v2133
    %v2136 = vpack.c.bf16 %v2135, %v2135
    %s2137 = scalar_lea.vmem %s6, 96
    %v2138 = vld [vmem:[%s2137] sm:$0xf]
    %v2139 = vld [vmem:[%s2137 + $0x4] sm:$0xf]
    %v2140 = vld [vmem:[%s2137 + $0x8] sm:$0xf]
    %v2141 = vld [vmem:[%s2137 + $0xc] sm:$0xf]
    %2143 = vrot.lane.b32.xlu0 %v2136, 32
    %v2144 = vpop.permute.xlu0 %2143
    %v2149 = vunpack.c.l.b16 %v2138
    %v2150 = vunpack.c.l.b16 %v2139
    %v2151 = vunpack.c.l.b16 %v2140
    %v2152 = vunpack.c.l.b16 %v2141
    %v2153 = vpack.c.b16 %v2150, %v2149
    %v2154 = vpack.c.b16 %v2152, %v2151
    %v2158 = vsel %vm171, %v2144, 0
    %2160 = vmatprep.subr.bf16.mxu0 0
    %2161 = vmatpush1.bf16.msra.mxu0 %v2153
    %2162 = vmatprep.subr.bf16.mxu0 0
    %2163 = vmatpush1.bf16.msra.mxu0 %v2154
    %2164 = vmatprep.subr.bf16.mxu0 0
    %2165 = vmatpush1.bf16.msra.mxu0 0
    %2166 = vmatprep.subr.bf16.mxu0 0
    %2167 = vmatpush1.bf16.msra.mxu0 0
    %2168 = vmatprep.subr.bf16.mxu0 0
    %2169 = vmatpush1.bf16.msra.mxu0 0
    %2170 = vmatprep.subr.bf16.mxu0 0
    %2171 = vmatpush1.bf16.msra.mxu0 0
    %2172 = vmatprep.subr.bf16.mxu0 0
    %2173 = vmatpush1.bf16.msra.mxu0 0
    %2174 = vmatprep.subr.bf16.mxu0 0
    %2175 = vmatpush1.bf16.msra.mxu0 0
    %2176 = vmatprep.subr.bf16.mxu0 0
    %2177 = vmatpush1.bf16.msra.mxu0 0
    %2178 = vmatprep.subr.bf16.mxu0 0
    %2179 = vmatpush1.bf16.msra.mxu0 0
    %2180 = vmatprep.subr.bf16.mxu0 0
    %2181 = vmatpush1.bf16.msra.mxu0 0
    %2182 = vmatprep.subr.bf16.mxu0 0
    %2183 = vmatpush1.bf16.msra.mxu0 0
    %2184 = vmatprep.subr.bf16.mxu0 0
    %2185 = vmatpush1.bf16.msra.mxu0 0
    %2186 = vmatprep.subr.bf16.mxu0 0
    %2187 = vmatpush1.bf16.msra.mxu0 0
    %2188 = vmatprep.subr.bf16.mxu0 0
    %2189 = vmatpush1.bf16.msra.mxu0 0
    %2190 = vmatprep.subr.bf16.mxu0 0
    %2191 = vmatpush1.bf16.msra.mxu0 0
    %2192 = vmatprep.mubr.bf16.mxu0 0
    %2193 = vmatmul.mubr.bf16.gmra.mrb[0].mxu0 %v2158
    %v2194 = vpop.f32.mrb[0].mxu0
    %v2195 = vadd.f32 0.0, %v2194
    %v2196 = vpop.f32.mrb[0].mxu0
    %v2197 = vpop.f32.mrb[0].mxu0
    %v2198 = vpop.f32.mrb[0].mxu0
    %2199 = vdwg.mxu0
    %v2200 = vadd.f32 %v2070, %v2195
    %2201 = vmatprep.subr.bf16.mxu0 0
    %2202 = vmatpush1.bf16.msra.mxu0 %v1290
    %2203 = vmatprep.subr.bf16.mxu0 0
    %2204 = vmatpush1.bf16.msra.mxu0 %v1291
    %2205 = vmatprep.subr.bf16.mxu0 0
    %2206 = vmatpush1.bf16.msra.mxu0 0
    %2207 = vmatprep.subr.bf16.mxu0 0
    %2208 = vmatpush1.bf16.msra.mxu0 0
    %2209 = vmatprep.subr.bf16.mxu0 0
    %2210 = vmatpush1.bf16.msra.mxu0 0
    %2211 = vmatprep.subr.bf16.mxu0 0
    %2212 = vmatpush1.bf16.msra.mxu0 0
    %2213 = vmatprep.subr.bf16.mxu0 0
    %2214 = vmatpush1.bf16.msra.mxu0 0
    %2215 = vmatprep.subr.bf16.mxu0 0
    %2216 = vmatpush1.bf16.msra.mxu0 0
    %2217 = vmatprep.subr.bf16.mxu0 0
    %2218 = vmatpush1.bf16.msra.mxu0 0
    %2219 = vmatprep.subr.bf16.mxu0 0
    %2220 = vmatpush1.bf16.msra.mxu0 0
    %2221 = vmatprep.subr.bf16.mxu0 0
    %2222 = vmatpush1.bf16.msra.mxu0 0
    %2223 = vmatprep.subr.bf16.mxu0 0
    %2224 = vmatpush1.bf16.msra.mxu0 0
    %2225 = vmatprep.subr.bf16.mxu0 0
    %2226 = vmatpush1.bf16.msra.mxu0 0
    %2227 = vmatprep.subr.bf16.mxu0 0
    %2228 = vmatpush1.bf16.msra.mxu0 0
    %2229 = vmatprep.subr.bf16.mxu0 0
    %2230 = vmatpush1.bf16.msra.mxu0 0
    %2231 = vmatprep.subr.bf16.mxu0 0
    %2232 = vmatpush1.bf16.msra.mxu0 0
    %2233 = vmatprep.mubr.bf16.mxu0 0
    %2234 = vmatmul.mubr.bf16.gmra.mrb[0].mxu0 %v2158
    %v2235 = vpop.f32.mrb[0].mxu0
    %v2236 = vadd.f32 0.0, %v2235
    %v2237 = vpop.f32.mrb[0].mxu0
    %v2238 = vpop.f32.mrb[0].mxu0
    %v2239 = vpop.f32.mrb[0].mxu0
    %2240 = vdwg.mxu0
    %v2241 = vadd.f32 %v1272, %v2236
    %v2242 = vxor.u32 %v2241, 2147483648
    %v2243 = vmul.f32 %v2242, 1.442695
    %v2244 = vpow.pop %v2243
    %v2245 = vadd.f32 %v2244, 1.0
    %v2246 = vrcp.pop %v2245
    %v2247 = vmul.f32 1.0, %v2246
    %v2248 = vtanh.pop %v2241
    %v2249 = vmul.f32 %v2247, %v2129
    %2251 = vrot.lane.b32.xlu0 %v2248, 64
    %v2252 = vpop.permute.xlu0 %2251
    %v2254 = vmul.f32 %v2247, %v2252
    %2256 = vrot.lane.b32.xlu0 %v2254, 32
    %v2257 = vpop.permute.xlu0 %2256
    %v2259 = vadd.f32 %v2249, %v2257
    %v2260 = vtanh.pop %v2259
    %2262 = vrot.lane.b32.xlu0 %v2260, 64
    %v2263 = vpop.permute.xlu0 %2262
    %v2265 = vmul.f32 %v2247, %v2263
    %v2266 = vpack.c.bf16 %v2265, %v2265
    %s2267 = scalar_lea.vmem %s6, 112
    %v2268 = vld [vmem:[%s2267] sm:$0xf]
    %v2269 = vld [vmem:[%s2267 + $0x4] sm:$0xf]
    %v2270 = vld [vmem:[%s2267 + $0x8] sm:$0xf]
    %v2271 = vld [vmem:[%s2267 + $0xc] sm:$0xf]
    %2273 = vrot.lane.b32.xlu0 %v2266, 32
    %v2274 = vpop.permute.xlu0 %2273
    %v2279 = vunpack.c.l.b16 %v2268
    %v2280 = vunpack.c.l.b16 %v2269
    %v2281 = vunpack.c.l.b16 %v2270
    %v2282 = vunpack.c.l.b16 %v2271
    %v2283 = vpack.c.b16 %v2280, %v2279
    %v2284 = vpack.c.b16 %v2282, %v2281
    %v2288 = vsel %vm171, %v2274, 0
    %2290 = vmatprep.subr.bf16.mxu0 0
    %2291 = vmatpush1.bf16.msra.mxu0 %v2283
    %2292 = vmatprep.subr.bf16.mxu0 0
    %2293 = vmatpush1.bf16.msra.mxu0 %v2284
    %2294 = vmatprep.subr.bf16.mxu0 0
    %2295 = vmatpush1.bf16.msra.mxu0 0
    %2296 = vmatprep.subr.bf16.mxu0 0
    %2297 = vmatpush1.bf16.msra.mxu0 0
    %2298 = vmatprep.subr.bf16.mxu0 0
    %2299 = vmatpush1.bf16.msra.mxu0 0
    %2300 = vmatprep.subr.bf16.mxu0 0
    %2301 = vmatpush1.bf16.msra.mxu0 0
    %2302 = vmatprep.subr.bf16.mxu0 0
    %2303 = vmatpush1.bf16.msra.mxu0 0
    %2304 = vmatprep.subr.bf16.mxu0 0
    %2305 = vmatpush1.bf16.msra.mxu0 0
    %2306 = vmatprep.subr.bf16.mxu0 0
    %2307 = vmatpush1.bf16.msra.mxu0 0
    %2308 = vmatprep.subr.bf16.mxu0 0
    %2309 = vmatpush1.bf16.msra.mxu0 0
    %2310 = vmatprep.subr.bf16.mxu0 0
    %2311 = vmatpush1.bf16.msra.mxu0 0
    %2312 = vmatprep.subr.bf16.mxu0 0
    %2313 = vmatpush1.bf16.msra.mxu0 0
    %2314 = vmatprep.subr.bf16.mxu0 0
    %2315 = vmatpush1.bf16.msra.mxu0 0
    %2316 = vmatprep.subr.bf16.mxu0 0
    %2317 = vmatpush1.bf16.msra.mxu0 0
    %2318 = vmatprep.subr.bf16.mxu0 0
    %2319 = vmatpush1.bf16.msra.mxu0 0
    %2320 = vmatprep.subr.bf16.mxu0 0
    %2321 = vmatpush1.bf16.msra.mxu0 0
    %2322 = vmatprep.mubr.bf16.mxu0 0
    %2323 = vmatmul.mubr.bf16.gmra.mrb[0].mxu0 %v2288
    %v2324 = vpop.f32.mrb[0].mxu0
    %v2325 = vadd.f32 0.0, %v2324
    %v2326 = vpop.f32.mrb[0].mxu0
    %v2327 = vpop.f32.mrb[0].mxu0
    %v2328 = vpop.f32.mrb[0].mxu0
    %2329 = vdwg.mxu0
    %v2330 = vadd.f32 %v2200, %v2325
    %v2331 = vld [vmem:[%s7] sm:$0x1]
    %v2333 = vlaneseq
    %v2334 = vshrl.u32 %v2333, 7
    %v2335 = vsub.s32 0, %v2334
    %v2336 = vrot.slane %v2331, %v2335
    %v2338 = vadd.f32 %v2330, %v2336
    %vm2339 = vcmask 9216
    %2340 = vst.msk [vmem:[#allocation2] sm:$0x3] %vm2339, %v2338
    // Predicated region
    $region34: #{stacked_lstm_forward.1} parent=1 // pred_check
      _
    $region35: #{stacked_lstm_forward.1} parent=1 // pred_check_branch
      %2342 = sbr.rel (0) target = $region37
    $region36: #{stacked_lstm_forward.1} parent=1 // pred_region
      %s2344 = ssub.s32 32, 32
      %2345 = vsyncadd [#allocation3], %s2344
      %s2347 = sshll.u32 [#allocation2], 4
      %s2348 = int_to_ptr.vmem [resolvable:$true] %s2347
      %2350 = dma.vmem_to_hbm [thread:$0]  %s2348, 32, %s8, [#allocation3]
    $region37: #{stacked_lstm_forward.1} parent=1 // pred_fallthru
      _
    // Predicated region
    $region38: #{stacked_lstm_forward.1} parent=1 // pred_check
      _
    $region39: #{stacked_lstm_forward.1} parent=1 // pred_check_branch
      %2352 = sbr.rel (0) target = $region41
    $region40: #{stacked_lstm_forward.1} parent=1 // pred_region
      %2353 = dma.done [#allocation3], 32
    $region41: #{stacked_lstm_forward.1} parent=1 // pred_fallthru
      _
    %2354 = vsyncpa [#allocation3], 1

</llo_original>
